<compile_context>
chip_gen: v7x
topology: tpu7x:2x2x1
jax: 0.10.0
libtpu: 0.0.40
codegen_flags: <defaults>
</compile_context>

<pallas_src>
import functools
import numpy as np

import jax
import jax.numpy as jnp
from jax.experimental import pallas as pl
from jax.experimental.pallas import tpu as pltpu


# ------------------------------ small helpers -------------------------------

def _round_up(v, m):
    return ((v + m - 1) // m) * m


def _pick_tile(n_pad):
    # Largest aligned tile; even 512x512 bf16 A tiles (512 KiB) double-buffered stay far
    # below the 32 MiB scoped VMEM default (and v7x's 64 MiB physical VMEM).
    for t in (512, 256, 128):
        if n_pad % t == 0:
            return t
    return 128


# ------------------------------ Pallas kernels -------------------------------

def _xform_kernel(x_ref, w_ref, h_ref, r_ref, *, hp):
    # Reassociated GraphConv, part 1:  [h | r] = x @ [W_rel | W_root]   (bf16 MXU, f32 acc)
    res = jnp.dot(x_ref[...], w_ref[...], preferred_element_type=jnp.float32)
    h_ref[...] = res[:, :hp].astype(h_ref.dtype)
    r_ref[...] = res[:, hp:].astype(r_ref.dtype)


def _agg_kernel(a_ref, h_ref, r_ref, b_ref, p_ref, *rest, with_score):
    # Reassociated GraphConv, part 2:  out = relu(A_norm @ h + r + b)
    # Fused extras: global_mean_pool partial (P_tile @ out) and, when a SAGPool follows,
    # the score's linear terms placed in lanes [hidden], [hidden+1] via W_sc.
    if with_score:
        wsc_ref, out_ref, pooled_ref, acc_ref = rest
    else:
        out_ref, pooled_ref, acc_ref = rest
        wsc_ref = None

    k = pl.program_id(1)

    @pl.when(k == 0)
    def _():
        acc_ref[...] = jnp.zeros_like(acc_ref)

    acc_ref[...] += jnp.dot(a_ref[...], h_ref[...],
                            preferred_element_type=jnp.float32)

    @pl.when(k == pl.num_programs(1) - 1)
    def _():
        out = acc_ref[...] + r_ref[...].astype(jnp.float32) + b_ref[...]
        out = jnp.maximum(out, 0.0)                     # f32 epilogue (v5e: no bf16 VPU)
        if with_score:
            # s_rel / s_root of the SAGPool score GNN, computed from the relu'd features
            # and written into the (otherwise zero) pad lanes `hidden`, `hidden+1`.
            out = out + jnp.dot(out.astype(jnp.bfloat16), wsc_ref[...],
                                preferred_element_type=jnp.float32)
        out_ref[...] = out
        # fused global_mean_pool partial for this row tile
        pooled_ref[...] = jnp.dot(p_ref[...], out, preferred_element_type=jnp.float32)


def _score_kernel(a_ref, s_ref, r_ref, o_ref, acc_ref):
    # SAGPool score:  score = A_norm @ s_rel + s_root + b   (inputs pre-broadcast over
    # 128 lanes in the wrapper so every load/store is lane-dense; bias folded into r).
    k = pl.program_id(1)

    @pl.when(k == 0)
    def _():
        acc_ref[...] = jnp.zeros_like(acc_ref)

    acc_ref[...] += jnp.dot(a_ref[...], s_ref[...],
                            preferred_element_type=jnp.float32)

    @pl.when(k == pl.num_programs(1) - 1)
    def _():
        o_ref[...] = acc_ref[...] + r_ref[...]


def _head_kernel(x_ref, w1_ref, b1_ref, w2_ref, b2_ref, o_ref, *, num_classes):
    # JumpingKnowledge(cat) features -> lin1 -> relu -> (dropout: identity) -> lin2
    # -> masked log_softmax over the real `num_classes` lanes.
    h = jnp.dot(x_ref[...], w1_ref[...], preferred_element_type=jnp.float32) + b1_ref[...]
    h = jnp.maximum(h, 0.0)
    logits = jnp.dot(h.astype(jnp.bfloat16), w2_ref[...],
                     preferred_element_type=jnp.float32) + b2_ref[...]
    lane = jax.lax.broadcasted_iota(jnp.int32, logits.shape, 1)
    logits = jnp.where(lane < num_classes, logits, -1e30)
    m = jnp.max(logits, axis=-1, keepdims=True)
    z = logits - m
    lse = jnp.log(jnp.sum(jnp.exp(z), axis=-1, keepdims=True))
    o_ref[...] = z - lse


# ------------------------------ kernel wrappers ------------------------------

def graphconv_layer(a_norm, x_bf, w_cat, b_row, p_mat, w_sc=None):
    """relu(GraphConv(mean)) with fused global_mean_pool (and fused score lin-terms)."""
    n_pad, f_in = x_bf.shape
    h2 = w_cat.shape[1]
    hp = h2 // 2
    b_pad = p_mat.shape[0]
    tm = _pick_tile(n_pad)
    tk = tm
    n_i = n_pad // tm
    n_k = n_pad // tk

    # kernel 1: feature transform (row-tiled, megacore-parallel)
    h_bf, r_bf = pl.pallas_call(
        functools.partial(_xform_kernel, hp=hp),
        out_shape=(jax.ShapeDtypeStruct((n_pad, hp), jnp.bfloat16),
                   jax.ShapeDtypeStruct((n_pad, hp), jnp.bfloat16)),
        grid=(n_i,),
        in_specs=[pl.BlockSpec((tm, f_in), lambda i: (i, 0)),
                  pl.BlockSpec((f_in, h2), lambda i: (0, 0))],
        out_specs=(pl.BlockSpec((tm, hp), lambda i: (i, 0)),
                   pl.BlockSpec((tm, hp), lambda i: (i, 0))),
        compiler_params=pltpu.CompilerParams(dimension_semantics=("parallel",)),
    )(x_bf, w_cat)

    # kernel 2: tiled aggregation + epilogue + fused mean-pool partials
    with_score = w_sc is not None
    in_specs = [pl.BlockSpec((tm, tk), lambda i, k: (i, k)),      # A_norm tile
                pl.BlockSpec((tk, hp), lambda i, k: (k, 0)),      # h (contraction rhs)
                pl.BlockSpec((tm, hp), lambda i, k: (i, 0)),      # r (root term)
                pl.BlockSpec((1, hp), lambda i, k: (0, 0)),       # bias row
                pl.BlockSpec((b_pad, tm), lambda i, k: (0, i))]   # pooling columns
    args = [a_norm, h_bf, r_bf, b_row, p_mat]
    if with_score:
        in_specs.append(pl.BlockSpec((hp, hp), lambda i, k: (0, 0)))
        args.append(w_sc)

    out, pooled_parts = pl.pallas_call(
        functools.partial(_agg_kernel, with_score=with_score),
        out_shape=(jax.ShapeDtypeStruct((n_pad, hp), jnp.float32),
                   jax.ShapeDtypeStruct((n_i, b_pad, hp), jnp.float32)),
        grid=(n_i, n_k),
        in_specs=in_specs,
        out_specs=(pl.BlockSpec((tm, hp), lambda i, k: (i, 0)),
                   pl.BlockSpec((None, b_pad, hp), lambda i, k: (i, 0, 0))),
        scratch_shapes=[pltpu.VMEM((tm, hp), jnp.float32)],
        compiler_params=pltpu.CompilerParams(
            dimension_semantics=("parallel", "arbitrary")),
    )(*args)

    pooled = pooled_parts.sum(axis=0)       # tiny XLA reduction over row-tile partials
    return out, pooled


def sag_score(a_norm, s_bcast, r_bcast):
    """score = A_norm @ s_rel + (s_root + b), lane-broadcast to 128 for dense stores."""
    n_pad, hp = r_bcast.shape
    tm = _pick_tile(n_pad)
    tk = tm
    return pl.pallas_call(
        _score_kernel,
        out_shape=jax.ShapeDtypeStruct((n_pad, hp), jnp.float32),
        grid=(n_pad // tm, n_pad // tk),
        in_specs=[pl.BlockSpec((tm, tk), lambda i, k: (i, k)),
                  pl.BlockSpec((tk, hp), lambda i, k: (k, 0)),
                  pl.BlockSpec((tm, hp), lambda i, k: (i, 0))],
        out_specs=pl.BlockSpec((tm, hp), lambda i, k: (i, 0)),
        scratch_shapes=[pltpu.VMEM((tm, hp), jnp.float32)],
        compiler_params=pltpu.CompilerParams(
            dimension_semantics=("parallel", "arbitrary")),
    )(a_norm, s_bcast, r_bcast)


def mlp_head(xcat_bf, w1, b1, w2, b2, num_classes):
    bp, kp = xcat_bf.shape
    hp = w1.shape[1]
    cp = w2.shape[1]
    return pl.pallas_call(
        functools.partial(_head_kernel, num_classes=num_classes),
        out_shape=jax.ShapeDtypeStruct((bp, cp), jnp.float32),
        grid=(1,),
        in_specs=[pl.BlockSpec((bp, kp), lambda i: (0, 0)),
                  pl.BlockSpec((kp, hp), lambda i: (0, 0)),
                  pl.BlockSpec((1, hp), lambda i: (0, 0)),
                  pl.BlockSpec((hp, cp), lambda i: (0, 0)),
                  pl.BlockSpec((1, cp), lambda i: (0, 0))],
        out_specs=pl.BlockSpec((bp, cp), lambda i: (0, 0)),
    )(xcat_bf, w1, b1, w2, b2)


# --------------------------- graph preparation glue --------------------------

def build_adj(edge_index, n_pad):
    A = np.zeros((n_pad, n_pad), np.float32)
    src, dst = edge_index
    A[dst, src] = 1.0              # message x_j from src, aggregated at dst
    return A


def _row_normalize(a_un):
    deg = a_un.sum(axis=1, keepdims=True)
    return (a_un / jnp.maximum(deg, 1.0)).astype(jnp.bfloat16)


def _pool_matrix(batch_pad, b_pad):
    oh = (batch_pad[None, :] ==
          jnp.arange(b_pad, dtype=jnp.int32)[:, None]).astype(jnp.float32)
    cnt = oh.sum(axis=1, keepdims=True)
    return oh / jnp.maximum(cnt, 1.0)


# -------------------------------- parameters ---------------------------------

def init_params(key, num_layers, hidden, in_dim, num_classes, hp=128, c_pad=128):
    assert hidden + 2 <= hp, "need two spare lanes for the fused score columns"

    def dense(k, shape, scale=0.1):
        return scale * jax.random.normal(k, shape, jnp.float32)

    f_pad = _round_up(in_dim, 128)
    kcat = num_layers * hidden
    kcat_pad = _round_up(kcat, 128)

    n_keys = 3 + 3 * (num_layers - 1) + 3 * (num_layers // 2) + 4
    keys = iter(jax.random.split(key, n_keys))

    def conv_params(in_dim_l, in_pad_l):
        w_rel = dense(next(keys), (in_dim_l, hidden))
        w_root = dense(next(keys), (in_dim_l, hidden))
        b = dense(next(keys), (hidden,))
        w_cat = jnp.zeros((in_pad_l, 2 * hp), jnp.float32)
        w_cat = w_cat.at[:in_dim_l, :hidden].set(w_rel)
        w_cat = w_cat.at[:in_dim_l, hp:hp + hidden].set(w_root)
        b_row = jnp.zeros((1, hp), jnp.float32).at[0, :hidden].set(b)
        return dict(w_cat=w_cat.astype(jnp.bfloat16), b=b_row)

    params = dict(hidden=hidden, hp=hp, c_pad=c_pad, kcat_pad=kcat_pad,
                  f_pad=f_pad, num_classes=num_classes)
    params["conv1"] = conv_params(in_dim, f_pad)
    params["convs"] = [conv_params(hidden, hp) for _ in range(num_layers - 1)]

    pools = []
    for _ in range(num_layers // 2):
        w_rel_p = dense(next(keys), (hidden, 1))
        w_root_p = dense(next(keys), (hidden, 1))
        b_p = dense(next(keys), (1,))
        w_sc = jnp.zeros((hp, hp), jnp.float32)
        w_sc = w_sc.at[:hidden, hidden].set(w_rel_p[:, 0])
        w_sc = w_sc.at[:hidden, hidden + 1].set(w_root_p[:, 0])
        pools.append(dict(w_sc=w_sc.astype(jnp.bfloat16), b=b_p[0]))
    params["pools"] = pools

    lin1_w = dense(next(keys), (kcat, hidden))
    lin1_b = dense(next(keys), (hidden,))
    lin2_w = dense(next(keys), (hidden, num_classes))
    lin2_b = dense(next(keys), (num_classes,))
    params["lin1_w"] = (jnp.zeros((kcat_pad, hp), jnp.float32)
                        .at[:kcat, :hidden].set(lin1_w).astype(jnp.bfloat16))
    params["lin1_b"] = jnp.zeros((1, hp), jnp.float32).at[0, :hidden].set(lin1_b)
    params["lin2_w"] = (jnp.zeros((hp, c_pad), jnp.float32)
                        .at[:hidden, :num_classes].set(lin2_w).astype(jnp.bfloat16))
    params["lin2_b"] = jnp.zeros((1, c_pad), jnp.float32).at[0, :num_classes].set(lin2_b)
    return params


# ---------------------------------- forward ----------------------------------

def sagpool_forward(params, x, edge_index, batch_np, num_graphs, ratio=0.8):
    hidden = params["hidden"]
    hp = params["hp"]
    num_classes = params["num_classes"]

    n, f = x.shape
    n_pad = _round_up(n, 128)
    f_pad = params["f_pad"]
    b_pad = _round_up(num_graphs + 1, 8)

    # static (shape-only) per-graph node counts; selection sizes derive from these
    counts = [int((batch_np == g).sum()) for g in range(num_graphs)]

    # padded device inputs (all layout plumbing happens once, in the wrapper)
    x_bf = jnp.pad(x, ((0, n_pad - n), (0, f_pad - f))).astype(jnp.bfloat16)
    a_un = jnp.asarray(build_adj(edge_index, n_pad))            # f32, unnormalized
    a_norm = _row_normalize(a_un)                                # bf16 for the MXU
    batch_pad = jnp.asarray(np.concatenate(
        [batch_np.astype(np.int32), np.full(n_pad - n, b_pad - 1, np.int32)]))
    p_mat = _pool_matrix(batch_pad, b_pad)

    # conv1 (+ fused global_mean_pool)
    c1 = params["conv1"]
    x_feat, pooled = graphconv_layer(a_norm, x_bf, c1["w_cat"], c1["b"], p_mat, None)
    xs = [pooled[:, :hidden]]

    convs = params["convs"]
    cur_counts = counts
    for i, cp in enumerate(convs):
        pool_follows = (i % 2 == 0) and (i < len(convs) - 1)
        w_sc = params["pools"][i // 2]["w_sc"] if pool_follows else None
        x_feat, pooled = graphconv_layer(a_norm, x_feat.astype(jnp.bfloat16),
                                         cp["w_cat"], cp["b"], p_mat, w_sc)
        xs.append(pooled[:, :hidden])

        if pool_follows:
            pp = params["pools"][i // 2]
            n_cur = x_feat.shape[0]

            # SAGPooling score (same normalized adjacency as before): the linear terms
            # s_rel/s_root were fused into the conv epilogue at lanes hidden, hidden+1;
            # broadcast them to 128 lanes so the aggregation kernel is fully lane-dense.
            s_b = jnp.broadcast_to(x_feat[:, hidden:hidden + 1],
                                   (n_cur, hp)).astype(jnp.bfloat16)
            r_b = jnp.broadcast_to(x_feat[:, hidden + 1:hidden + 2], (n_cur, hp)) + pp["b"]
            score_b = sag_score(a_norm, s_b, r_b)         # [n_cur, hp], all lanes equal
            score_vec = score_b[:, 0]

            # per-graph top-k on DEVICE (k = ceil(ratio*|V_g|) is static per graph)
            ks = [max(1, int(np.ceil(ratio * c))) for c in cur_counts]
            n_sel = sum(ks)
            n_sel_pad = _round_up(n_sel, 128)
            perms = []
            for g in range(num_graphs):
                masked = jnp.where(batch_pad == g, score_vec, jnp.float32(-1e30))
                _, idx = jax.lax.top_k(masked, ks[g])
                perms.append(idx)
            perm = jnp.concatenate(perms)
            perm = jnp.pad(perm, (0, n_sel_pad - n_sel))
            valid = jnp.arange(n_sel_pad) < n_sel

            # gather + tanh gate (SAGPooling), zero the padded rows
            x_feat = x_feat[perm] * jnp.tanh(score_b[perm])
            x_feat = jnp.where(valid[:, None], x_feat, 0.0)

            # filter_adj: induced subgraph + re-normalize for mean aggregation (on device)
            a_un = a_un[perm][:, perm]
            a_un = a_un * (valid[:, None] & valid[None, :]).astype(jnp.float32)
            a_norm = _row_normalize(a_un)

            batch_pad = jnp.where(valid, batch_pad[perm], b_pad - 1)
            p_mat = _pool_matrix(batch_pad, b_pad)
            cur_counts = ks

    # JumpingKnowledge(cat) -> lin1 -> relu -> (dropout identity in eval) -> lin2
    # -> log_softmax, fused in one Pallas kernel over padded, lane-dense shapes.
    xcat = jnp.concatenate(xs, axis=1)
    xcat = jnp.pad(xcat, ((0, 0), (0, params["kcat_pad"] - xcat.shape[1])))
    logp = mlp_head(xcat.astype(jnp.bfloat16), params["lin1_w"], params["lin1_b"],
                    params["lin2_w"], params["lin2_b"], num_classes)
    return logp[:num_graphs, :num_classes]


# ------------------------------------ main ------------------------------------

if __name__ == "__main__":
    num_layers = 3
    hidden = 32
    in_dim = 1001
    num_classes = 31
    ratio = 0.8

    # two graphs of 6 nodes each, bidirectional ring edges
    nodes_per_graph = 6
    num_graphs = 2
    N = nodes_per_graph * num_graphs
    src, dst = [], []
    for g in range(num_graphs):
        base = g * nodes_per_graph
        for v in range(nodes_per_graph):
            u, w = base + v, base + (v + 1) % nodes_per_graph
            src += [u, w]
            dst += [w, u]
    edge_index = np.stack([np.array(src, np.int32), np.array(dst, np.int32)])
    batch = np.repeat(np.arange(num_graphs, dtype=np.int32), nodes_per_graph)

    key = jax.random.PRNGKey(0)
    kx, kp = jax.random.split(key)
    x = jax.random.normal(kx, (N, in_dim), jnp.float32)
    params = init_params(kp, num_layers, hidden, in_dim, num_classes)

    out = sagpool_forward(params, x, edge_index, batch, num_graphs, ratio)
    out = jax.block_until_ready(out)

    assert out.shape == (num_graphs, num_classes)
    # log_softmax rows must exponentiate-sum to ~1
    assert np.allclose(np.exp(np.asarray(out)).sum(axis=-1), 1.0, atol=1e-3)
    print("KERNEL_OK")
</pallas_src>

<mosaic_0001>
module attributes {stable_mosaic.version = 11 : i64} {
  func.func @_xform_kernel(%arg0: i32, %arg1: memref<128x1024xbf16, #tpu.memory_space<vmem>>, %arg2: memref<1024x256xbf16, #tpu.memory_space<vmem>>, %arg3: memref<128x128xbf16, #tpu.memory_space<vmem>>, %arg4: memref<128x128xbf16, #tpu.memory_space<vmem>>) attributes {dimension_semantics = [#tpu.dimension_semantics<parallel>], iteration_bounds = array<i64: 1>, scalar_prefetch = 0 : i64, scratch_operands = 0 : i64, tpu.core_type = #tpu.core_type<tc>, window_params = [{transform_indices = @transform_0, window_bounds = array<i64: 128, 1024>}, {pipeline_mode = #tpu.pipeline_mode<synchronous>, transform_indices = @transform_1, window_bounds = array<i64: 1024, 256>}, {transform_indices = @transform_2, window_bounds = array<i64: 128, 128>}, {transform_indices = @transform_3, window_bounds = array<i64: 128, 128>}]} {
    %c0 = arith.constant 0 : index
    %c0_0 = arith.constant 0 : index
    %0 = vector.load %arg1[%c0, %c0_0] : memref<128x1024xbf16, #tpu.memory_space<vmem>>, vector<128x1024xbf16>
    %c0_1 = arith.constant 0 : index
    %c0_2 = arith.constant 0 : index
    %1 = vector.load %arg2[%c0_1, %c0_2] : memref<1024x256xbf16, #tpu.memory_space<vmem>>, vector<1024x256xbf16>
    %cst = arith.constant dense<0.000000e+00> : vector<128x256xf32>
    %2 = tpu.matmul %0, %1, %cst {dimension_numbers = #tpu.dot_dimension_numbers<[1], [0], [0], [1], [0, 0, 1, 1], [], []>} : vector<128x1024xbf16>, vector<1024x256xbf16>, vector<128x256xf32> -> vector<128x256xf32>
    %3 = vector.extract_strided_slice %2 {offsets = [0, 0], sizes = [128, 128], strides = [1, 1]} : vector<128x256xf32> to vector<128x128xf32>
    %4 = arith.truncf %3 : vector<128x128xf32> to vector<128x128xbf16>
    %c0_3 = arith.constant 0 : index
    %c0_4 = arith.constant 0 : index
    %5 = vector.load %arg3[%c0_3, %c0_4] : memref<128x128xbf16, #tpu.memory_space<vmem>>, vector<128x128xbf16>
    tpu.vector_store %arg3[%c0_3, %c0_4], %4 {strides = array<i32>} : memref<128x128xbf16, #tpu.memory_space<vmem>>, vector<128x128xbf16>,
    %6 = vector.extract_strided_slice %2 {offsets = [0, 128], sizes = [128, 128], strides = [1, 1]} : vector<128x256xf32> to vector<128x128xf32>
    %7 = arith.truncf %6 : vector<128x128xf32> to vector<128x128xbf16>
    %c0_5 = arith.constant 0 : index
    %c0_6 = arith.constant 0 : index
    %8 = vector.load %arg4[%c0_5, %c0_6] : memref<128x128xbf16, #tpu.memory_space<vmem>>, vector<128x128xbf16>
    tpu.vector_store %arg4[%c0_5, %c0_6], %7 {strides = array<i32>} : memref<128x128xbf16, #tpu.memory_space<vmem>>, vector<128x128xbf16>,
    return
  }
  func.func @transform_0(%arg0: i32) -> (i32, i32) {
    %c0_i32 = arith.constant 0 : i32
    %c0_i32_0 = arith.constant 0 : i32
    return %arg0, %c0_i32 : i32, i32
  }
  func.func @transform_1(%arg0: i32) -> (i32, i32) {
    %c0_i32 = arith.constant 0 : i32
    %c0_i32_0 = arith.constant 0 : i32
    %c0_i32_1 = arith.constant 0 : i32
    return %c0_i32, %c0_i32_0 : i32, i32
  }
  func.func @transform_2(%arg0: i32) -> (i32, i32) {
    %c0_i32 = arith.constant 0 : i32
    %c0_i32_0 = arith.constant 0 : i32
    return %arg0, %c0_i32 : i32, i32
  }
  func.func @transform_3(%arg0: i32) -> (i32, i32) {
    %c0_i32 = arith.constant 0 : i32
    %c0_i32_0 = arith.constant 0 : i32
    return %arg0, %c0_i32 : i32, i32
  }
}

</mosaic_0001>

<llo_original>
// kernel: tpu_custom_call.1
$region0: #{tpu_custom_call.1}
  #allocation0 [shape = 'u32[]', space=smem, size = 0x4, offset = 0x4, fixed_abs, tag = 'smem constant byte address 0x4 - core index']
  #allocation1 [shape = 'u32[144,128]{1,0:T(1,128)}', space=vmem, size = 0x12000, scoped, tag = 'internal scratch']
  %s0 = inlined_call_operand.hbm [shape: bf16[128,1024], index: 0, kind: input, shape index: {}]
  %s1 = inlined_call_operand.hbm [shape: bf16[1024,256], index: 1, kind: input, shape index: {}]
  %s2 = inlined_call_operand.hbm [shape: bf16[128,128], index: 2, kind: output, shape index: {0}]
  %s3 = inlined_call_operand.hbm [shape: bf16[128,128], index: 3, kind: output, shape index: {1}]
  %4 = xla_tuple %s2, %s3
  %s5 = sld [smem:[#allocation0]]
  $region34: #{tpu_custom_call.1} parent=0
    _
  %s7 = ssub.s32 1, %s5
  %s8 = scalar_select 0, %s7, %s5
  $region1: #{tpu_custom_call.1} parent=0
    #allocation2 [shape = 'u8[262144]{0}', space=vmem, size = 0x40000, scoped, tag = 'input window, operand 0, single buffered']
    #allocation3 [shape = 's32[1]{0}', space=sflag, size = 0x4, scoped, tag = 'scoped memory for tpu_custom_call.1']
    #allocation4 [shape = 's32[1]{0}', space=sflag, size = 0x4, scoped, tag = 'scoped memory for tpu_custom_call.1']
    #allocation5 [shape = 'u8[524288]{0}', space=vmem, size = 0x80000, scoped, tag = 'input window, operand 1, single buffered']
    #allocation6 [shape = 's32[1]{0}', space=sflag, size = 0x4, scoped, tag = 'scoped memory for tpu_custom_call.1']
    #allocation7 [shape = 'u8[32768]{0}', space=vmem, size = 0x8000, scoped, tag = 'output window, operand 0, single buffered']
    #allocation8 [shape = 'u8[32768]{0}', space=vmem, size = 0x8000, scoped, tag = 'output window, operand 1, single buffered']
    #allocation9 [shape = 's32[1]{0}', space=sflag, size = 0x4, scoped, tag = 'scoped memory for tpu_custom_call.1']
    %9 = vsyncpa [#allocation3], 0
    %10 = vsyncpa [#allocation6], 0
    %11 = vsyncpa [#allocation4], 0
    %12 = vsyncpa [#allocation9], 0
    // Predicated region
    $region2: #{tpu_custom_call.1} parent=1 // pred_check
      _
    $region3: #{tpu_custom_call.1} parent=1 // pred_check_branch
      %14 = sbr.rel (0) target = $region5
    $region4: #{tpu_custom_call.1} parent=1 // pred_region
      %s16 = ssub.s32 8192, 8192
      %17 = vsyncadd [#allocation3], %s16
      %s18 = sshll.u32 [#allocation2], 4
      %s19 = int_to_ptr.vmem [resolvable:$true] %s18
      %24 = dma.hbm_to_vmem [thread:$0]  %s0, 8192, %s19, [#allocation3], 512, 512, 32
    $region5: #{tpu_custom_call.1} parent=1 // pred_fallthru
      _
    // Predicated region
    $region6: #{tpu_custom_call.1} parent=1 // pred_check
      _
    $region7: #{tpu_custom_call.1} parent=1 // pred_check_branch
      %26 = sbr.rel (0) target = $region9
    $region8: #{tpu_custom_call.1} parent=1 // pred_region
      %s28 = ssub.s32 16384, 16384
      %29 = vsyncadd [#allocation6], %s28
      %s30 = sshll.u32 [#allocation5], 4
      %s31 = int_to_ptr.vmem [resolvable:$true] %s30
      %36 = dma.hbm_to_vmem [thread:$0]  %s1, 16384, %s31, [#allocation6], 128, 128, 8
    $region9: #{tpu_custom_call.1} parent=1 // pred_fallthru
      _
    // Predicated region
    $region10: #{tpu_custom_call.1} parent=1 // pred_check
      _
    $region11: #{tpu_custom_call.1} parent=1 // pred_check_branch
      %38 = sbr.rel (0) target = $region13
    $region12: #{tpu_custom_call.1} parent=1 // pred_region
      %39 = dma.done [#allocation3], 8192
    $region13: #{tpu_custom_call.1} parent=1 // pred_fallthru
      _
    // Predicated region
    $region14: #{tpu_custom_call.1} parent=1 // pred_check
      _
    $region15: #{tpu_custom_call.1} parent=1 // pred_check_branch
      %41 = sbr.rel (0) target = $region17
    $region16: #{tpu_custom_call.1} parent=1 // pred_region
      %42 = dma.done [#allocation6], 16384
    $region17: #{tpu_custom_call.1} parent=1 // pred_fallthru
      _
    %v43 = vld [vmem:[#allocation2] sm:$0xff]
    %v44 = vld [vmem:[#allocation2 + $0x8] sm:$0xff]
    %v45 = vld [vmem:[#allocation2 + $0x10] sm:$0xff]
    %v46 = vld [vmem:[#allocation2 + $0x18] sm:$0xff]
    %v47 = vld [vmem:[#allocation2 + $0x20] sm:$0xff]
    %v48 = vld [vmem:[#allocation2 + $0x28] sm:$0xff]
    %v49 = vld [vmem:[#allocation2 + $0x30] sm:$0xff]
    %v50 = vld [vmem:[#allocation2 + $0x38] sm:$0xff]
    %v51 = vld [vmem:[#allocation2 + $0x40] sm:$0xff]
    %v52 = vld [vmem:[#allocation2 + $0x48] sm:$0xff]
    %v53 = vld [vmem:[#allocation2 + $0x50] sm:$0xff]
    %v54 = vld [vmem:[#allocation2 + $0x58] sm:$0xff]
    %v55 = vld [vmem:[#allocation2 + $0x60] sm:$0xff]
    %v56 = vld [vmem:[#allocation2 + $0x68] sm:$0xff]
    %v57 = vld [vmem:[#allocation2 + $0x70] sm:$0xff]
    %v58 = vld [vmem:[#allocation2 + $0x78] sm:$0xff]
    %v59 = vld [vmem:[#allocation2 + $0x80] sm:$0xff]
    %v60 = vld [vmem:[#allocation2 + $0x88] sm:$0xff]
    %v61 = vld [vmem:[#allocation2 + $0x90] sm:$0xff]
    %v62 = vld [vmem:[#allocation2 + $0x98] sm:$0xff]
    %v63 = vld [vmem:[#allocation2 + $0xa0] sm:$0xff]
    %v64 = vld [vmem:[#allocation2 + $0xa8] sm:$0xff]
    %v65 = vld [vmem:[#allocation2 + $0xb0] sm:$0xff]
    %v66 = vld [vmem:[#allocation2 + $0xb8] sm:$0xff]
    %v67 = vld [vmem:[#allocation2 + $0xc0] sm:$0xff]
    %v68 = vld [vmem:[#allocation2 + $0xc8] sm:$0xff]
    %v69 = vld [vmem:[#allocation2 + $0xd0] sm:$0xff]
    %v70 = vld [vmem:[#allocation2 + $0xd8] sm:$0xff]
    %v71 = vld [vmem:[#allocation2 + $0xe0] sm:$0xff]
    %v72 = vld [vmem:[#allocation2 + $0xe8] sm:$0xff]
    %v73 = vld [vmem:[#allocation2 + $0xf0] sm:$0xff]
    %v74 = vld [vmem:[#allocation2 + $0xf8] sm:$0xff]
    %v75 = vld [vmem:[#allocation2 + $0x100] sm:$0xff]
    %v76 = vld [vmem:[#allocation2 + $0x108] sm:$0xff]
    %v77 = vld [vmem:[#allocation2 + $0x110] sm:$0xff]
    %v78 = vld [vmem:[#allocation2 + $0x118] sm:$0xff]
    %v79 = vld [vmem:[#allocation2 + $0x120] sm:$0xff]
    %v80 = vld [vmem:[#allocation2 + $0x128] sm:$0xff]
    %v81 = vld [vmem:[#allocation2 + $0x130] sm:$0xff]
    %v82 = vld [vmem:[#allocation2 + $0x138] sm:$0xff]
    %v83 = vld [vmem:[#allocation2 + $0x140] sm:$0xff]
    %v84 = vld [vmem:[#allocation2 + $0x148] sm:$0xff]
    %v85 = vld [vmem:[#allocation2 + $0x150] sm:$0xff]
    %v86 = vld [vmem:[#allocation2 + $0x158] sm:$0xff]
    %v87 = vld [vmem:[#allocation2 + $0x160] sm:$0xff]
    %v88 = vld [vmem:[#allocation2 + $0x168] sm:$0xff]
    %v89 = vld [vmem:[#allocation2 + $0x170] sm:$0xff]
    %v90 = vld [vmem:[#allocation2 + $0x178] sm:$0xff]
    %v91 = vld [vmem:[#allocation2 + $0x180] sm:$0xff]
    %v92 = vld [vmem:[#allocation2 + $0x188] sm:$0xff]
    %v93 = vld [vmem:[#allocation2 + $0x190] sm:$0xff]
    %v94 = vld [vmem:[#allocation2 + $0x198] sm:$0xff]
    %v95 = vld [vmem:[#allocation2 + $0x1a0] sm:$0xff]
    %v96 = vld [vmem:[#allocation2 + $0x1a8] sm:$0xff]
    %v97 = vld [vmem:[#allocation2 + $0x1b0] sm:$0xff]
    %v98 = vld [vmem:[#allocation2 + $0x1b8] sm:$0xff]
    %v99 = vld [vmem:[#allocation2 + $0x1c0] sm:$0xff]
    %v100 = vld [vmem:[#allocation2 + $0x1c8] sm:$0xff]
    %v101 = vld [vmem:[#allocation2 + $0x1d0] sm:$0xff]
    %v102 = vld [vmem:[#allocation2 + $0x1d8] sm:$0xff]
    %v103 = vld [vmem:[#allocation2 + $0x1e0] sm:$0xff]
    %v104 = vld [vmem:[#allocation2 + $0x1e8] sm:$0xff]
    %v105 = vld [vmem:[#allocation2 + $0x1f0] sm:$0xff]
    %v106 = vld [vmem:[#allocation2 + $0x1f8] sm:$0xff]
    %v107 = vld [vmem:[#allocation5] sm:$0xff]
    %v108 = vld [vmem:[#allocation5 + $0x8] sm:$0xff]
    %v109 = vld [vmem:[#allocation5 + $0x10] sm:$0xff]
    %v110 = vld [vmem:[#allocation5 + $0x18] sm:$0xff]
    %v111 = vld [vmem:[#allocation5 + $0x20] sm:$0xff]
    %v112 = vld [vmem:[#allocation5 + $0x28] sm:$0xff]
    %v113 = vld [vmem:[#allocation5 + $0x30] sm:$0xff]
    %v114 = vld [vmem:[#allocation5 + $0x38] sm:$0xff]
    %v115 = vld [vmem:[#allocation5 + $0x40] sm:$0xff]
    %v116 = vld [vmem:[#allocation5 + $0x48] sm:$0xff]
    %v117 = vld [vmem:[#allocation5 + $0x50] sm:$0xff]
    %v118 = vld [vmem:[#allocation5 + $0x58] sm:$0xff]
    %v119 = vld [vmem:[#allocation5 + $0x60] sm:$0xff]
    %v120 = vld [vmem:[#allocation5 + $0x68] sm:$0xff]
    %v121 = vld [vmem:[#allocation5 + $0x70] sm:$0xff]
    %v122 = vld [vmem:[#allocation5 + $0x78] sm:$0xff]
    %v123 = vld [vmem:[#allocation5 + $0x80] sm:$0xff]
    %v124 = vld [vmem:[#allocation5 + $0x88] sm:$0xff]
    %v125 = vld [vmem:[#allocation5 + $0x90] sm:$0xff]
    %v126 = vld [vmem:[#allocation5 + $0x98] sm:$0xff]
    %v127 = vld [vmem:[#allocation5 + $0xa0] sm:$0xff]
    %v128 = vld [vmem:[#allocation5 + $0xa8] sm:$0xff]
    %v129 = vld [vmem:[#allocation5 + $0xb0] sm:$0xff]
    %v130 = vld [vmem:[#allocation5 + $0xb8] sm:$0xff]
    %v131 = vld [vmem:[#allocation5 + $0xc0] sm:$0xff]
    %v132 = vld [vmem:[#allocation5 + $0xc8] sm:$0xff]
    %v133 = vld [vmem:[#allocation5 + $0xd0] sm:$0xff]
    %v134 = vld [vmem:[#allocation5 + $0xd8] sm:$0xff]
    %v135 = vld [vmem:[#allocation5 + $0xe0] sm:$0xff]
    %v136 = vld [vmem:[#allocation5 + $0xe8] sm:$0xff]
    %v137 = vld [vmem:[#allocation5 + $0xf0] sm:$0xff]
    %v138 = vld [vmem:[#allocation5 + $0xf8] sm:$0xff]
    %v139 = vld [vmem:[#allocation5 + $0x100] sm:$0xff]
    %v140 = vld [vmem:[#allocation5 + $0x108] sm:$0xff]
    %v141 = vld [vmem:[#allocation5 + $0x110] sm:$0xff]
    %v142 = vld [vmem:[#allocation5 + $0x118] sm:$0xff]
    %v143 = vld [vmem:[#allocation5 + $0x120] sm:$0xff]
    %v144 = vld [vmem:[#allocation5 + $0x128] sm:$0xff]
    %v145 = vld [vmem:[#allocation5 + $0x130] sm:$0xff]
    %v146 = vld [vmem:[#allocation5 + $0x138] sm:$0xff]
    %v147 = vld [vmem:[#allocation5 + $0x140] sm:$0xff]
    %v148 = vld [vmem:[#allocation5 + $0x148] sm:$0xff]
    %v149 = vld [vmem:[#allocation5 + $0x150] sm:$0xff]
    %v150 = vld [vmem:[#allocation5 + $0x158] sm:$0xff]
    %v151 = vld [vmem:[#allocation5 + $0x160] sm:$0xff]
    %v152 = vld [vmem:[#allocation5 + $0x168] sm:$0xff]
    %v153 = vld [vmem:[#allocation5 + $0x170] sm:$0xff]
    %v154 = vld [vmem:[#allocation5 + $0x178] sm:$0xff]
    %v155 = vld [vmem:[#allocation5 + $0x180] sm:$0xff]
    %v156 = vld [vmem:[#allocation5 + $0x188] sm:$0xff]
    %v157 = vld [vmem:[#allocation5 + $0x190] sm:$0xff]
    %v158 = vld [vmem:[#allocation5 + $0x198] sm:$0xff]
    %v159 = vld [vmem:[#allocation5 + $0x1a0] sm:$0xff]
    %v160 = vld [vmem:[#allocation5 + $0x1a8] sm:$0xff]
    %v161 = vld [vmem:[#allocation5 + $0x1b0] sm:$0xff]
    %v162 = vld [vmem:[#allocation5 + $0x1b8] sm:$0xff]
    %v163 = vld [vmem:[#allocation5 + $0x1c0] sm:$0xff]
    %v164 = vld [vmem:[#allocation5 + $0x1c8] sm:$0xff]
    %v165 = vld [vmem:[#allocation5 + $0x1d0] sm:$0xff]
    %v166 = vld [vmem:[#allocation5 + $0x1d8] sm:$0xff]
    %v167 = vld [vmem:[#allocation5 + $0x1e0] sm:$0xff]
    %v168 = vld [vmem:[#allocation5 + $0x1e8] sm:$0xff]
    %v169 = vld [vmem:[#allocation5 + $0x1f0] sm:$0xff]
    %v170 = vld [vmem:[#allocation5 + $0x1f8] sm:$0xff]
    %v171 = vld [vmem:[#allocation5 + $0x200] sm:$0xff]
    %v172 = vld [vmem:[#allocation5 + $0x208] sm:$0xff]
    %v173 = vld [vmem:[#allocation5 + $0x210] sm:$0xff]
    %v174 = vld [vmem:[#allocation5 + $0x218] sm:$0xff]
    %v175 = vld [vmem:[#allocation5 + $0x220] sm:$0xff]
    %v176 = vld [vmem:[#allocation5 + $0x228] sm:$0xff]
    %v177 = vld [vmem:[#allocation5 + $0x230] sm:$0xff]
    %v178 = vld [vmem:[#allocation5 + $0x238] sm:$0xff]
    %v179 = vld [vmem:[#allocation5 + $0x240] sm:$0xff]
    %v180 = vld [vmem:[#allocation5 + $0x248] sm:$0xff]
    %v181 = vld [vmem:[#allocation5 + $0x250] sm:$0xff]
    %v182 = vld [vmem:[#allocation5 + $0x258] sm:$0xff]
    %v183 = vld [vmem:[#allocation5 + $0x260] sm:$0xff]
    %v184 = vld [vmem:[#allocation5 + $0x268] sm:$0xff]
    %v185 = vld [vmem:[#allocation5 + $0x270] sm:$0xff]
    %v186 = vld [vmem:[#allocation5 + $0x278] sm:$0xff]
    %v187 = vld [vmem:[#allocation5 + $0x280] sm:$0xff]
    %v188 = vld [vmem:[#allocation5 + $0x288] sm:$0xff]
    %v189 = vld [vmem:[#allocation5 + $0x290] sm:$0xff]
    %v190 = vld [vmem:[#allocation5 + $0x298] sm:$0xff]
    %v191 = vld [vmem:[#allocation5 + $0x2a0] sm:$0xff]
    %v192 = vld [vmem:[#allocation5 + $0x2a8] sm:$0xff]
    %v193 = vld [vmem:[#allocation5 + $0x2b0] sm:$0xff]
    %v194 = vld [vmem:[#allocation5 + $0x2b8] sm:$0xff]
    %v195 = vld [vmem:[#allocation5 + $0x2c0] sm:$0xff]
    %v196 = vld [vmem:[#allocation5 + $0x2c8] sm:$0xff]
    %v197 = vld [vmem:[#allocation5 + $0x2d0] sm:$0xff]
    %v198 = vld [vmem:[#allocation5 + $0x2d8] sm:$0xff]
    %v199 = vld [vmem:[#allocation5 + $0x2e0] sm:$0xff]
    %v200 = vld [vmem:[#allocation5 + $0x2e8] sm:$0xff]
    %v201 = vld [vmem:[#allocation5 + $0x2f0] sm:$0xff]
    %v202 = vld [vmem:[#allocation5 + $0x2f8] sm:$0xff]
    %v203 = vld [vmem:[#allocation5 + $0x300] sm:$0xff]
    %v204 = vld [vmem:[#allocation5 + $0x308] sm:$0xff]
    %v205 = vld [vmem:[#allocation5 + $0x310] sm:$0xff]
    %v206 = vld [vmem:[#allocation5 + $0x318] sm:$0xff]
    %v207 = vld [vmem:[#allocation5 + $0x320] sm:$0xff]
    %v208 = vld [vmem:[#allocation5 + $0x328] sm:$0xff]
    %v209 = vld [vmem:[#allocation5 + $0x330] sm:$0xff]
    %v210 = vld [vmem:[#allocation5 + $0x338] sm:$0xff]
    %v211 = vld [vmem:[#allocation5 + $0x340] sm:$0xff]
    %v212 = vld [vmem:[#allocation5 + $0x348] sm:$0xff]
    %v213 = vld [vmem:[#allocation5 + $0x350] sm:$0xff]
    %v214 = vld [vmem:[#allocation5 + $0x358] sm:$0xff]
    %v215 = vld [vmem:[#allocation5 + $0x360] sm:$0xff]
    %v216 = vld [vmem:[#allocation5 + $0x368] sm:$0xff]
    %v217 = vld [vmem:[#allocation5 + $0x370] sm:$0xff]
    %v218 = vld [vmem:[#allocation5 + $0x378] sm:$0xff]
    %v219 = vld [vmem:[#allocation5 + $0x380] sm:$0xff]
    %v220 = vld [vmem:[#allocation5 + $0x388] sm:$0xff]
    %v221 = vld [vmem:[#allocation5 + $0x390] sm:$0xff]
    %v222 = vld [vmem:[#allocation5 + $0x398] sm:$0xff]
    %v223 = vld [vmem:[#allocation5 + $0x3a0] sm:$0xff]
    %v224 = vld [vmem:[#allocation5 + $0x3a8] sm:$0xff]
    %v225 = vld [vmem:[#allocation5 + $0x3b0] sm:$0xff]
    %v226 = vld [vmem:[#allocation5 + $0x3b8] sm:$0xff]
    %v227 = vld [vmem:[#allocation5 + $0x3c0] sm:$0xff]
    %v228 = vld [vmem:[#allocation5 + $0x3c8] sm:$0xff]
    %v229 = vld [vmem:[#allocation5 + $0x3d0] sm:$0xff]
    %v230 = vld [vmem:[#allocation5 + $0x3d8] sm:$0xff]
    %v231 = vld [vmem:[#allocation5 + $0x3e0] sm:$0xff]
    %v232 = vld [vmem:[#allocation5 + $0x3e8] sm:$0xff]
    %v233 = vld [vmem:[#allocation5 + $0x3f0] sm:$0xff]
    %v234 = vld [vmem:[#allocation5 + $0x3f8] sm:$0xff]
    %v299 = vunpack.c.l.b16 %v43
    %v300 = vunpack.c.h.b16 %v43
    %v301 = vunpack.c.l.b16 %v44
    %v302 = vunpack.c.h.b16 %v44
    %v303 = vunpack.c.l.b16 %v45
    %v304 = vunpack.c.h.b16 %v45
    %v305 = vunpack.c.l.b16 %v46
    %v306 = vunpack.c.h.b16 %v46
    %v307 = vunpack.c.l.b16 %v47
    %v308 = vunpack.c.h.b16 %v47
    %v309 = vunpack.c.l.b16 %v48
    %v310 = vunpack.c.h.b16 %v48
    %v311 = vunpack.c.l.b16 %v49
    %v312 = vunpack.c.h.b16 %v49
    %v313 = vunpack.c.l.b16 %v50
    %v314 = vunpack.c.h.b16 %v50
    %v315 = vunpack.c.l.b16 %v51
    %v316 = vunpack.c.h.b16 %v51
    %v317 = vunpack.c.l.b16 %v52
    %v318 = vunpack.c.h.b16 %v52
    %v319 = vunpack.c.l.b16 %v53
    %v320 = vunpack.c.h.b16 %v53
    %v321 = vunpack.c.l.b16 %v54
    %v322 = vunpack.c.h.b16 %v54
    %v323 = vunpack.c.l.b16 %v55
    %v324 = vunpack.c.h.b16 %v55
    %v325 = vunpack.c.l.b16 %v56
    %v326 = vunpack.c.h.b16 %v56
    %v327 = vunpack.c.l.b16 %v57
    %v328 = vunpack.c.h.b16 %v57
    %v329 = vunpack.c.l.b16 %v58
    %v330 = vunpack.c.h.b16 %v58
    %v331 = vunpack.c.l.b16 %v59
    %v332 = vunpack.c.h.b16 %v59
    %v333 = vunpack.c.l.b16 %v60
    %v334 = vunpack.c.h.b16 %v60
    %v335 = vunpack.c.l.b16 %v61
    %v336 = vunpack.c.h.b16 %v61
    %v337 = vunpack.c.l.b16 %v62
    %v338 = vunpack.c.h.b16 %v62
    %v339 = vunpack.c.l.b16 %v63
    %v340 = vunpack.c.h.b16 %v63
    %v341 = vunpack.c.l.b16 %v64
    %v342 = vunpack.c.h.b16 %v64
    %v343 = vunpack.c.l.b16 %v65
    %v344 = vunpack.c.h.b16 %v65
    %v345 = vunpack.c.l.b16 %v66
    %v346 = vunpack.c.h.b16 %v66
    %v347 = vunpack.c.l.b16 %v67
    %v348 = vunpack.c.h.b16 %v67
    %v349 = vunpack.c.l.b16 %v68
    %v350 = vunpack.c.h.b16 %v68
    %v351 = vunpack.c.l.b16 %v69
    %v352 = vunpack.c.h.b16 %v69
    %v353 = vunpack.c.l.b16 %v70
    %v354 = vunpack.c.h.b16 %v70
    %v355 = vunpack.c.l.b16 %v71
    %v356 = vunpack.c.h.b16 %v71
    %v357 = vunpack.c.l.b16 %v72
    %v358 = vunpack.c.h.b16 %v72
    %v359 = vunpack.c.l.b16 %v73
    %v360 = vunpack.c.h.b16 %v73
    %v361 = vunpack.c.l.b16 %v74
    %v362 = vunpack.c.h.b16 %v74
    %v363 = vunpack.c.l.b16 %v75
    %v364 = vunpack.c.h.b16 %v75
    %v365 = vunpack.c.l.b16 %v76
    %v366 = vunpack.c.h.b16 %v76
    %v367 = vunpack.c.l.b16 %v77
    %v368 = vunpack.c.h.b16 %v77
    %v369 = vunpack.c.l.b16 %v78
    %v370 = vunpack.c.h.b16 %v78
    %v371 = vunpack.c.l.b16 %v79
    %v372 = vunpack.c.h.b16 %v79
    %v373 = vunpack.c.l.b16 %v80
    %v374 = vunpack.c.h.b16 %v80
    %v375 = vunpack.c.l.b16 %v81
    %v376 = vunpack.c.h.b16 %v81
    %v377 = vunpack.c.l.b16 %v82
    %v378 = vunpack.c.h.b16 %v82
    %v379 = vunpack.c.l.b16 %v83
    %v380 = vunpack.c.h.b16 %v83
    %v381 = vunpack.c.l.b16 %v84
    %v382 = vunpack.c.h.b16 %v84
    %v383 = vunpack.c.l.b16 %v85
    %v384 = vunpack.c.h.b16 %v85
    %v385 = vunpack.c.l.b16 %v86
    %v386 = vunpack.c.h.b16 %v86
    %v387 = vunpack.c.l.b16 %v87
    %v388 = vunpack.c.h.b16 %v87
    %v389 = vunpack.c.l.b16 %v88
    %v390 = vunpack.c.h.b16 %v88
    %v391 = vunpack.c.l.b16 %v89
    %v392 = vunpack.c.h.b16 %v89
    %v393 = vunpack.c.l.b16 %v90
    %v394 = vunpack.c.h.b16 %v90
    %v395 = vunpack.c.l.b16 %v91
    %v396 = vunpack.c.h.b16 %v91
    %v397 = vunpack.c.l.b16 %v92
    %v398 = vunpack.c.h.b16 %v92
    %v399 = vunpack.c.l.b16 %v93
    %v400 = vunpack.c.h.b16 %v93
    %v401 = vunpack.c.l.b16 %v94
    %v402 = vunpack.c.h.b16 %v94
    %v403 = vunpack.c.l.b16 %v95
    %v404 = vunpack.c.h.b16 %v95
    %v405 = vunpack.c.l.b16 %v96
    %v406 = vunpack.c.h.b16 %v96
    %v407 = vunpack.c.l.b16 %v97
    %v408 = vunpack.c.h.b16 %v97
    %v409 = vunpack.c.l.b16 %v98
    %v410 = vunpack.c.h.b16 %v98
    %v411 = vunpack.c.l.b16 %v99
    %v412 = vunpack.c.h.b16 %v99
    %v413 = vunpack.c.l.b16 %v100
    %v414 = vunpack.c.h.b16 %v100
    %v415 = vunpack.c.l.b16 %v101
    %v416 = vunpack.c.h.b16 %v101
    %v417 = vunpack.c.l.b16 %v102
    %v418 = vunpack.c.h.b16 %v102
    %v419 = vunpack.c.l.b16 %v103
    %v420 = vunpack.c.h.b16 %v103
    %v421 = vunpack.c.l.b16 %v104
    %v422 = vunpack.c.h.b16 %v104
    %v423 = vunpack.c.l.b16 %v105
    %v424 = vunpack.c.h.b16 %v105
    %v425 = vunpack.c.l.b16 %v106
    %v426 = vunpack.c.h.b16 %v106
    %v427 = vpack.c.b16 %v307, %v299
    %v428 = vpack.c.b16 %v308, %v300
    %v429 = vpack.c.b16 %v309, %v301
    %v430 = vpack.c.b16 %v310, %v302
    %v431 = vpack.c.b16 %v311, %v303
    %v432 = vpack.c.b16 %v312, %v304
    %v433 = vpack.c.b16 %v313, %v305
    %v434 = vpack.c.b16 %v314, %v306
    %v435 = vpack.c.b16 %v323, %v315
    %v436 = vpack.c.b16 %v324, %v316
    %v437 = vpack.c.b16 %v325, %v317
    %v438 = vpack.c.b16 %v326, %v318
    %v439 = vpack.c.b16 %v327, %v319
    %v440 = vpack.c.b16 %v328, %v320
    %v441 = vpack.c.b16 %v329, %v321
    %v442 = vpack.c.b16 %v330, %v322
    %v443 = vpack.c.b16 %v339, %v331
    %v444 = vpack.c.b16 %v340, %v332
    %v445 = vpack.c.b16 %v341, %v333
    %v446 = vpack.c.b16 %v342, %v334
    %v447 = vpack.c.b16 %v343, %v335
    %v448 = vpack.c.b16 %v344, %v336
    %v449 = vpack.c.b16 %v345, %v337
    %v450 = vpack.c.b16 %v346, %v338
    %v451 = vpack.c.b16 %v355, %v347
    %v452 = vpack.c.b16 %v356, %v348
    %v453 = vpack.c.b16 %v357, %v349
    %v454 = vpack.c.b16 %v358, %v350
    %v455 = vpack.c.b16 %v359, %v351
    %v456 = vpack.c.b16 %v360, %v352
    %v457 = vpack.c.b16 %v361, %v353
    %v458 = vpack.c.b16 %v362, %v354
    %v459 = vpack.c.b16 %v371, %v363
    %v460 = vpack.c.b16 %v372, %v364
    %v461 = vpack.c.b16 %v373, %v365
    %v462 = vpack.c.b16 %v374, %v366
    %v463 = vpack.c.b16 %v375, %v367
    %v464 = vpack.c.b16 %v376, %v368
    %v465 = vpack.c.b16 %v377, %v369
    %v466 = vpack.c.b16 %v378, %v370
    %v467 = vpack.c.b16 %v387, %v379
    %v468 = vpack.c.b16 %v388, %v380
    %v469 = vpack.c.b16 %v389, %v381
    %v470 = vpack.c.b16 %v390, %v382
    %v471 = vpack.c.b16 %v391, %v383
    %v472 = vpack.c.b16 %v392, %v384
    %v473 = vpack.c.b16 %v393, %v385
    %v474 = vpack.c.b16 %v394, %v386
    %v475 = vpack.c.b16 %v403, %v395
    %v476 = vpack.c.b16 %v404, %v396
    %v477 = vpack.c.b16 %v405, %v397
    %v478 = vpack.c.b16 %v406, %v398
    %v479 = vpack.c.b16 %v407, %v399
    %v480 = vpack.c.b16 %v408, %v400
    %v481 = vpack.c.b16 %v409, %v401
    %v482 = vpack.c.b16 %v410, %v402
    %v483 = vpack.c.b16 %v419, %v411
    %v484 = vpack.c.b16 %v420, %v412
    %v485 = vpack.c.b16 %v421, %v413
    %v486 = vpack.c.b16 %v422, %v414
    %v487 = vpack.c.b16 %v423, %v415
    %v488 = vpack.c.b16 %v424, %v416
    %v489 = vpack.c.b16 %v425, %v417
    %v490 = vpack.c.b16 %v426, %v418
    %v683 = vunpack.c.l.b16 %v107
    %v684 = vunpack.c.h.b16 %v107
    %v685 = vunpack.c.l.b16 %v108
    %v686 = vunpack.c.h.b16 %v108
    %v687 = vunpack.c.l.b16 %v109
    %v688 = vunpack.c.h.b16 %v109
    %v689 = vunpack.c.l.b16 %v110
    %v690 = vunpack.c.h.b16 %v110
    %v691 = vunpack.c.l.b16 %v111
    %v692 = vunpack.c.h.b16 %v111
    %v693 = vunpack.c.l.b16 %v112
    %v694 = vunpack.c.h.b16 %v112
    %v695 = vunpack.c.l.b16 %v113
    %v696 = vunpack.c.h.b16 %v113
    %v697 = vunpack.c.l.b16 %v114
    %v698 = vunpack.c.h.b16 %v114
    %v699 = vunpack.c.l.b16 %v115
    %v700 = vunpack.c.h.b16 %v115
    %v701 = vunpack.c.l.b16 %v116
    %v702 = vunpack.c.h.b16 %v116
    %v703 = vunpack.c.l.b16 %v117
    %v704 = vunpack.c.h.b16 %v117
    %v705 = vunpack.c.l.b16 %v118
    %v706 = vunpack.c.h.b16 %v118
    %v707 = vunpack.c.l.b16 %v119
    %v708 = vunpack.c.h.b16 %v119
    %v709 = vunpack.c.l.b16 %v120
    %v710 = vunpack.c.h.b16 %v120
    %v711 = vunpack.c.l.b16 %v121
    %v712 = vunpack.c.h.b16 %v121
    %v713 = vunpack.c.l.b16 %v122
    %v714 = vunpack.c.h.b16 %v122
    %v715 = vunpack.c.l.b16 %v123
    %v716 = vunpack.c.h.b16 %v123
    %v717 = vunpack.c.l.b16 %v124
    %v718 = vunpack.c.h.b16 %v124
    %v719 = vunpack.c.l.b16 %v125
    %v720 = vunpack.c.h.b16 %v125
    %v721 = vunpack.c.l.b16 %v126
    %v722 = vunpack.c.h.b16 %v126
    %v723 = vunpack.c.l.b16 %v127
    %v724 = vunpack.c.h.b16 %v127
    %v725 = vunpack.c.l.b16 %v128
    %v726 = vunpack.c.h.b16 %v128
    %v727 = vunpack.c.l.b16 %v129
    %v728 = vunpack.c.h.b16 %v129
    %v729 = vunpack.c.l.b16 %v130
    %v730 = vunpack.c.h.b16 %v130
    %v731 = vunpack.c.l.b16 %v131
    %v732 = vunpack.c.h.b16 %v131
    %v733 = vunpack.c.l.b16 %v132
    %v734 = vunpack.c.h.b16 %v132
    %v735 = vunpack.c.l.b16 %v133
    %v736 = vunpack.c.h.b16 %v133
    %v737 = vunpack.c.l.b16 %v134
    %v738 = vunpack.c.h.b16 %v134
    %v739 = vunpack.c.l.b16 %v135
    %v740 = vunpack.c.h.b16 %v135
    %v741 = vunpack.c.l.b16 %v136
    %v742 = vunpack.c.h.b16 %v136
    %v743 = vunpack.c.l.b16 %v137
    %v744 = vunpack.c.h.b16 %v137
    %v745 = vunpack.c.l.b16 %v138
    %v746 = vunpack.c.h.b16 %v138
    %v747 = vunpack.c.l.b16 %v139
    %v748 = vunpack.c.h.b16 %v139
    %v749 = vunpack.c.l.b16 %v140
    %v750 = vunpack.c.h.b16 %v140
    %v751 = vunpack.c.l.b16 %v141
    %v752 = vunpack.c.h.b16 %v141
    %v753 = vunpack.c.l.b16 %v142
    %v754 = vunpack.c.h.b16 %v142
    %v755 = vunpack.c.l.b16 %v143
    %v756 = vunpack.c.h.b16 %v143
    %v757 = vunpack.c.l.b16 %v144
    %v758 = vunpack.c.h.b16 %v144
    %v759 = vunpack.c.l.b16 %v145
    %v760 = vunpack.c.h.b16 %v145
    %v761 = vunpack.c.l.b16 %v146
    %v762 = vunpack.c.h.b16 %v146
    %v763 = vunpack.c.l.b16 %v147
    %v764 = vunpack.c.h.b16 %v147
    %v765 = vunpack.c.l.b16 %v148
    %v766 = vunpack.c.h.b16 %v148
    %v767 = vunpack.c.l.b16 %v149
    %v768 = vunpack.c.h.b16 %v149
    %v769 = vunpack.c.l.b16 %v150
    %v770 = vunpack.c.h.b16 %v150
    %v771 = vunpack.c.l.b16 %v151
    %v772 = vunpack.c.h.b16 %v151
    %v773 = vunpack.c.l.b16 %v152
    %v774 = vunpack.c.h.b16 %v152
    %v775 = vunpack.c.l.b16 %v153
    %v776 = vunpack.c.h.b16 %v153
    %v777 = vunpack.c.l.b16 %v154
    %v778 = vunpack.c.h.b16 %v154
    %v779 = vunpack.c.l.b16 %v155
    %v780 = vunpack.c.h.b16 %v155
    %v781 = vunpack.c.l.b16 %v156
    %v782 = vunpack.c.h.b16 %v156
    %v783 = vunpack.c.l.b16 %v157
    %v784 = vunpack.c.h.b16 %v157
    %v785 = vunpack.c.l.b16 %v158
    %v786 = vunpack.c.h.b16 %v158
    %v787 = vunpack.c.l.b16 %v159
    %v788 = vunpack.c.h.b16 %v159
    %v789 = vunpack.c.l.b16 %v160
    %v790 = vunpack.c.h.b16 %v160
    %v791 = vunpack.c.l.b16 %v161
    %v792 = vunpack.c.h.b16 %v161
    %v793 = vunpack.c.l.b16 %v162
    %v794 = vunpack.c.h.b16 %v162
    %v795 = vunpack.c.l.b16 %v163
    %v796 = vunpack.c.h.b16 %v163
    %v797 = vunpack.c.l.b16 %v164
    %v798 = vunpack.c.h.b16 %v164
    %v799 = vunpack.c.l.b16 %v165
    %v800 = vunpack.c.h.b16 %v165
    %v801 = vunpack.c.l.b16 %v166
    %v802 = vunpack.c.h.b16 %v166
    %v803 = vunpack.c.l.b16 %v167
    %v804 = vunpack.c.h.b16 %v167
    %v805 = vunpack.c.l.b16 %v168
    %v806 = vunpack.c.h.b16 %v168
    %v807 = vunpack.c.l.b16 %v169
    %v808 = vunpack.c.h.b16 %v169
    %v809 = vunpack.c.l.b16 %v170
    %v810 = vunpack.c.h.b16 %v170
    %v811 = vunpack.c.l.b16 %v171
    %v812 = vunpack.c.h.b16 %v171
    %v813 = vunpack.c.l.b16 %v172
    %v814 = vunpack.c.h.b16 %v172
    %v815 = vunpack.c.l.b16 %v173
    %v816 = vunpack.c.h.b16 %v173
    %v817 = vunpack.c.l.b16 %v174
    %v818 = vunpack.c.h.b16 %v174
    %v819 = vunpack.c.l.b16 %v175
    %v820 = vunpack.c.h.b16 %v175
    %v821 = vunpack.c.l.b16 %v176
    %v822 = vunpack.c.h.b16 %v176
    %v823 = vunpack.c.l.b16 %v177
    %v824 = vunpack.c.h.b16 %v177
    %v825 = vunpack.c.l.b16 %v178
    %v826 = vunpack.c.h.b16 %v178
    %v827 = vunpack.c.l.b16 %v179
    %v828 = vunpack.c.h.b16 %v179
    %v829 = vunpack.c.l.b16 %v180
    %v830 = vunpack.c.h.b16 %v180
    %v831 = vunpack.c.l.b16 %v181
    %v832 = vunpack.c.h.b16 %v181
    %v833 = vunpack.c.l.b16 %v182
    %v834 = vunpack.c.h.b16 %v182
    %v835 = vunpack.c.l.b16 %v183
    %v836 = vunpack.c.h.b16 %v183
    %v837 = vunpack.c.l.b16 %v184
    %v838 = vunpack.c.h.b16 %v184
    %v839 = vunpack.c.l.b16 %v185
    %v840 = vunpack.c.h.b16 %v185
    %v841 = vunpack.c.l.b16 %v186
    %v842 = vunpack.c.h.b16 %v186
    %v843 = vunpack.c.l.b16 %v187
    %v844 = vunpack.c.h.b16 %v187
    %v845 = vunpack.c.l.b16 %v188
    %v846 = vunpack.c.h.b16 %v188
    %v847 = vunpack.c.l.b16 %v189
    %v848 = vunpack.c.h.b16 %v189
    %v849 = vunpack.c.l.b16 %v190
    %v850 = vunpack.c.h.b16 %v190
    %v851 = vunpack.c.l.b16 %v191
    %v852 = vunpack.c.h.b16 %v191
    %v853 = vunpack.c.l.b16 %v192
    %v854 = vunpack.c.h.b16 %v192
    %v855 = vunpack.c.l.b16 %v193
    %v856 = vunpack.c.h.b16 %v193
    %v857 = vunpack.c.l.b16 %v194
    %v858 = vunpack.c.h.b16 %v194
    %v859 = vunpack.c.l.b16 %v195
    %v860 = vunpack.c.h.b16 %v195
    %v861 = vunpack.c.l.b16 %v196
    %v862 = vunpack.c.h.b16 %v196
    %v863 = vunpack.c.l.b16 %v197
    %v864 = vunpack.c.h.b16 %v197
    %v865 = vunpack.c.l.b16 %v198
    %v866 = vunpack.c.h.b16 %v198
    %v867 = vunpack.c.l.b16 %v199
    %v868 = vunpack.c.h.b16 %v199
    %v869 = vunpack.c.l.b16 %v200
    %v870 = vunpack.c.h.b16 %v200
    %v871 = vunpack.c.l.b16 %v201
    %v872 = vunpack.c.h.b16 %v201
    %v873 = vunpack.c.l.b16 %v202
    %v874 = vunpack.c.h.b16 %v202
    %v875 = vunpack.c.l.b16 %v203
    %v876 = vunpack.c.h.b16 %v203
    %v877 = vunpack.c.l.b16 %v204
    %v878 = vunpack.c.h.b16 %v204
    %v879 = vunpack.c.l.b16 %v205
    %v880 = vunpack.c.h.b16 %v205
    %v881 = vunpack.c.l.b16 %v206
    %v882 = vunpack.c.h.b16 %v206
    %v883 = vunpack.c.l.b16 %v207
    %v884 = vunpack.c.h.b16 %v207
    %v885 = vunpack.c.l.b16 %v208
    %v886 = vunpack.c.h.b16 %v208
    %v887 = vunpack.c.l.b16 %v209
    %v888 = vunpack.c.h.b16 %v209
    %v889 = vunpack.c.l.b16 %v210
    %v890 = vunpack.c.h.b16 %v210
    %v891 = vunpack.c.l.b16 %v211
    %v892 = vunpack.c.h.b16 %v211
    %v893 = vunpack.c.l.b16 %v212
    %v894 = vunpack.c.h.b16 %v212
    %v895 = vunpack.c.l.b16 %v213
    %v896 = vunpack.c.h.b16 %v213
    %v897 = vunpack.c.l.b16 %v214
    %v898 = vunpack.c.h.b16 %v214
    %v899 = vunpack.c.l.b16 %v215
    %v900 = vunpack.c.h.b16 %v215
    %v901 = vunpack.c.l.b16 %v216
    %v902 = vunpack.c.h.b16 %v216
    %v903 = vunpack.c.l.b16 %v217
    %v904 = vunpack.c.h.b16 %v217
    %v905 = vunpack.c.l.b16 %v218
    %v906 = vunpack.c.h.b16 %v218
    %v907 = vunpack.c.l.b16 %v219
    %v908 = vunpack.c.h.b16 %v219
    %v909 = vunpack.c.l.b16 %v220
    %v910 = vunpack.c.h.b16 %v220
    %v911 = vunpack.c.l.b16 %v221
    %v912 = vunpack.c.h.b16 %v221
    %v913 = vunpack.c.l.b16 %v222
    %v914 = vunpack.c.h.b16 %v222
    %v915 = vunpack.c.l.b16 %v223
    %v916 = vunpack.c.h.b16 %v223
    %v917 = vunpack.c.l.b16 %v224
    %v918 = vunpack.c.h.b16 %v224
    %v919 = vunpack.c.l.b16 %v225
    %v920 = vunpack.c.h.b16 %v225
    %v921 = vunpack.c.l.b16 %v226
    %v922 = vunpack.c.h.b16 %v226
    %v923 = vunpack.c.l.b16 %v227
    %v924 = vunpack.c.h.b16 %v227
    %v925 = vunpack.c.l.b16 %v228
    %v926 = vunpack.c.h.b16 %v228
    %v927 = vunpack.c.l.b16 %v229
    %v928 = vunpack.c.h.b16 %v229
    %v929 = vunpack.c.l.b16 %v230
    %v930 = vunpack.c.h.b16 %v230
    %v931 = vunpack.c.l.b16 %v231
    %v932 = vunpack.c.h.b16 %v231
    %v933 = vunpack.c.l.b16 %v232
    %v934 = vunpack.c.h.b16 %v232
    %v935 = vunpack.c.l.b16 %v233
    %v936 = vunpack.c.h.b16 %v233
    %v937 = vunpack.c.l.b16 %v234
    %v938 = vunpack.c.h.b16 %v234
    %v939 = vpack.c.b16 %v685, %v683
    %v940 = vpack.c.b16 %v686, %v684
    %v941 = vpack.c.b16 %v689, %v687
    %v942 = vpack.c.b16 %v690, %v688
    %v943 = vpack.c.b16 %v693, %v691
    %v944 = vpack.c.b16 %v694, %v692
    %v945 = vpack.c.b16 %v697, %v695
    %v946 = vpack.c.b16 %v698, %v696
    %v947 = vpack.c.b16 %v701, %v699
    %v948 = vpack.c.b16 %v702, %v700
    %v949 = vpack.c.b16 %v705, %v703
    %v950 = vpack.c.b16 %v706, %v704
    %v951 = vpack.c.b16 %v709, %v707
    %v952 = vpack.c.b16 %v710, %v708
    %v953 = vpack.c.b16 %v713, %v711
    %v954 = vpack.c.b16 %v714, %v712
    %v955 = vpack.c.b16 %v717, %v715
    %v956 = vpack.c.b16 %v718, %v716
    %v957 = vpack.c.b16 %v721, %v719
    %v958 = vpack.c.b16 %v722, %v720
    %v959 = vpack.c.b16 %v725, %v723
    %v960 = vpack.c.b16 %v726, %v724
    %v961 = vpack.c.b16 %v729, %v727
    %v962 = vpack.c.b16 %v730, %v728
    %v963 = vpack.c.b16 %v733, %v731
    %v964 = vpack.c.b16 %v734, %v732
    %v965 = vpack.c.b16 %v737, %v735
    %v966 = vpack.c.b16 %v738, %v736
    %v967 = vpack.c.b16 %v741, %v739
    %v968 = vpack.c.b16 %v742, %v740
    %v969 = vpack.c.b16 %v745, %v743
    %v970 = vpack.c.b16 %v746, %v744
    %v971 = vpack.c.b16 %v749, %v747
    %v972 = vpack.c.b16 %v750, %v748
    %v973 = vpack.c.b16 %v753, %v751
    %v974 = vpack.c.b16 %v754, %v752
    %v975 = vpack.c.b16 %v757, %v755
    %v976 = vpack.c.b16 %v758, %v756
    %v977 = vpack.c.b16 %v761, %v759
    %v978 = vpack.c.b16 %v762, %v760
    %v979 = vpack.c.b16 %v765, %v763
    %v980 = vpack.c.b16 %v766, %v764
    %v981 = vpack.c.b16 %v769, %v767
    %v982 = vpack.c.b16 %v770, %v768
    %v983 = vpack.c.b16 %v773, %v771
    %v984 = vpack.c.b16 %v774, %v772
    %v985 = vpack.c.b16 %v777, %v775
    %v986 = vpack.c.b16 %v778, %v776
    %v987 = vpack.c.b16 %v781, %v779
    %v988 = vpack.c.b16 %v782, %v780
    %v989 = vpack.c.b16 %v785, %v783
    %v990 = vpack.c.b16 %v786, %v784
    %v991 = vpack.c.b16 %v789, %v787
    %v992 = vpack.c.b16 %v790, %v788
    %v993 = vpack.c.b16 %v793, %v791
    %v994 = vpack.c.b16 %v794, %v792
    %v995 = vpack.c.b16 %v797, %v795
    %v996 = vpack.c.b16 %v798, %v796
    %v997 = vpack.c.b16 %v801, %v799
    %v998 = vpack.c.b16 %v802, %v800
    %v999 = vpack.c.b16 %v805, %v803
    %v1000 = vpack.c.b16 %v806, %v804
    %v1001 = vpack.c.b16 %v809, %v807
    %v1002 = vpack.c.b16 %v810, %v808
    %v1003 = vpack.c.b16 %v813, %v811
    %v1004 = vpack.c.b16 %v814, %v812
    %v1005 = vpack.c.b16 %v817, %v815
    %v1006 = vpack.c.b16 %v818, %v816
    %v1007 = vpack.c.b16 %v821, %v819
    %v1008 = vpack.c.b16 %v822, %v820
    %v1009 = vpack.c.b16 %v825, %v823
    %v1010 = vpack.c.b16 %v826, %v824
    %v1011 = vpack.c.b16 %v829, %v827
    %v1012 = vpack.c.b16 %v830, %v828
    %v1013 = vpack.c.b16 %v833, %v831
    %v1014 = vpack.c.b16 %v834, %v832
    %v1015 = vpack.c.b16 %v837, %v835
    %v1016 = vpack.c.b16 %v838, %v836
    %v1017 = vpack.c.b16 %v841, %v839
    %v1018 = vpack.c.b16 %v842, %v840
    %v1019 = vpack.c.b16 %v845, %v843
    %v1020 = vpack.c.b16 %v846, %v844
    %v1021 = vpack.c.b16 %v849, %v847
    %v1022 = vpack.c.b16 %v850, %v848
    %v1023 = vpack.c.b16 %v853, %v851
    %v1024 = vpack.c.b16 %v854, %v852
    %v1025 = vpack.c.b16 %v857, %v855
    %v1026 = vpack.c.b16 %v858, %v856
    %v1027 = vpack.c.b16 %v861, %v859
    %v1028 = vpack.c.b16 %v862, %v860
    %v1029 = vpack.c.b16 %v865, %v863
    %v1030 = vpack.c.b16 %v866, %v864
    %v1031 = vpack.c.b16 %v869, %v867
    %v1032 = vpack.c.b16 %v870, %v868
    %v1033 = vpack.c.b16 %v873, %v871
    %v1034 = vpack.c.b16 %v874, %v872
    %v1035 = vpack.c.b16 %v877, %v875
    %v1036 = vpack.c.b16 %v878, %v876
    %v1037 = vpack.c.b16 %v881, %v879
    %v1038 = vpack.c.b16 %v882, %v880
    %v1039 = vpack.c.b16 %v885, %v883
    %v1040 = vpack.c.b16 %v886, %v884
    %v1041 = vpack.c.b16 %v889, %v887
    %v1042 = vpack.c.b16 %v890, %v888
    %v1043 = vpack.c.b16 %v893, %v891
    %v1044 = vpack.c.b16 %v894, %v892
    %v1045 = vpack.c.b16 %v897, %v895
    %v1046 = vpack.c.b16 %v898, %v896
    %v1047 = vpack.c.b16 %v901, %v899
    %v1048 = vpack.c.b16 %v902, %v900
    %v1049 = vpack.c.b16 %v905, %v903
    %v1050 = vpack.c.b16 %v906, %v904
    %v1051 = vpack.c.b16 %v909, %v907
    %v1052 = vpack.c.b16 %v910, %v908
    %v1053 = vpack.c.b16 %v913, %v911
    %v1054 = vpack.c.b16 %v914, %v912
    %v1055 = vpack.c.b16 %v917, %v915
    %v1056 = vpack.c.b16 %v918, %v916
    %v1057 = vpack.c.b16 %v921, %v919
    %v1058 = vpack.c.b16 %v922, %v920
    %v1059 = vpack.c.b16 %v925, %v923
    %v1060 = vpack.c.b16 %v926, %v924
    %v1061 = vpack.c.b16 %v929, %v927
    %v1062 = vpack.c.b16 %v930, %v928
    %v1063 = vpack.c.b16 %v933, %v931
    %v1064 = vpack.c.b16 %v934, %v932
    %v1065 = vpack.c.b16 %v937, %v935
    %v1066 = vpack.c.b16 %v938, %v936
    %1195 = vmatprep.subr.bf16.mxu0 %v940
    %1196 = vmatpush1.bf16.msra.mxu0 %v939
    %1197 = vmatprep.subr.bf16.mxu0 %v942
    %1198 = vmatpush1.bf16.msra.mxu0 %v941
    %1199 = vmatprep.subr.bf16.mxu0 %v944
    %1200 = vmatpush1.bf16.msra.mxu0 %v943
    %1201 = vmatprep.subr.bf16.mxu0 %v946
    %1202 = vmatpush1.bf16.msra.mxu0 %v945
    %1203 = vmatprep.subr.bf16.mxu0 %v948
    %1204 = vmatpush1.bf16.msra.mxu0 %v947
    %1205 = vmatprep.subr.bf16.mxu0 %v950
    %1206 = vmatpush1.bf16.msra.mxu0 %v949
    %1207 = vmatprep.subr.bf16.mxu0 %v952
    %1208 = vmatpush1.bf16.msra.mxu0 %v951
    %1209 = vmatprep.subr.bf16.mxu0 %v954
    %1210 = vmatpush1.bf16.msra.mxu0 %v953
    %1211 = vmatprep.subr.bf16.mxu0 %v956
    %1212 = vmatpush1.bf16.msra.mxu0 %v955
    %1213 = vmatprep.subr.bf16.mxu0 %v958
    %1214 = vmatpush1.bf16.msra.mxu0 %v957
    %1215 = vmatprep.subr.bf16.mxu0 %v960
    %1216 = vmatpush1.bf16.msra.mxu0 %v959
    %1217 = vmatprep.subr.bf16.mxu0 %v962
    %1218 = vmatpush1.bf16.msra.mxu0 %v961
    %1219 = vmatprep.subr.bf16.mxu0 %v964
    %1220 = vmatpush1.bf16.msra.mxu0 %v963
    %1221 = vmatprep.subr.bf16.mxu0 %v966
    %1222 = vmatpush1.bf16.msra.mxu0 %v965
    %1223 = vmatprep.subr.bf16.mxu0 %v968
    %1224 = vmatpush1.bf16.msra.mxu0 %v967
    %1225 = vmatprep.subr.bf16.mxu0 %v970
    %1226 = vmatpush1.bf16.msra.mxu0 %v969
    %1227 = vmatprep.mubr.bf16.mxu0 %v428
    %1228 = vmatmul.mubr.bf16.gmra.mrb[0].mxu0 %v427
    %v1229 = vpop.f32.mrb[0].mxu0
    %v1230 = vadd.f32 0.0, %v1229
    %v1231 = vpop.f32.mrb[0].mxu0
    %v1232 = vadd.f32 0.0, %v1231
    %v1233 = vpop.f32.mrb[0].mxu0
    %v1234 = vadd.f32 0.0, %v1233
    %v1235 = vpop.f32.mrb[0].mxu0
    %v1236 = vadd.f32 0.0, %v1235
    %1237 = vmatprep.mubr.bf16.mxu0 %v436
    %1238 = vmatmul.mubr.bf16.gmra.mrb[0].mxu0 %v435
    %v1239 = vpop.f32.mrb[0].mxu0
    %v1240 = vadd.f32 0.0, %v1239
    %v1241 = vpop.f32.mrb[0].mxu0
    %v1242 = vadd.f32 0.0, %v1241
    %v1243 = vpop.f32.mrb[0].mxu0
    %v1244 = vadd.f32 0.0, %v1243
    %v1245 = vpop.f32.mrb[0].mxu0
    %v1246 = vadd.f32 0.0, %v1245
    %1247 = vmatprep.mubr.bf16.mxu0 %v444
    %1248 = vmatmul.mubr.bf16.gmra.mrb[0].mxu0 %v443
    %v1249 = vpop.f32.mrb[0].mxu0
    %v1250 = vadd.f32 0.0, %v1249
    %v1251 = vpop.f32.mrb[0].mxu0
    %v1252 = vadd.f32 0.0, %v1251
    %v1253 = vpop.f32.mrb[0].mxu0
    %v1254 = vadd.f32 0.0, %v1253
    %v1255 = vpop.f32.mrb[0].mxu0
    %v1256 = vadd.f32 0.0, %v1255
    %1257 = vmatprep.mubr.bf16.mxu0 %v452
    %1258 = vmatmul.mubr.bf16.gmra.mrb[0].mxu0 %v451
    %v1259 = vpop.f32.mrb[0].mxu0
    %v1260 = vadd.f32 0.0, %v1259
    %v1261 = vpop.f32.mrb[0].mxu0
    %v1262 = vadd.f32 0.0, %v1261
    %v1263 = vpop.f32.mrb[0].mxu0
    %v1264 = vadd.f32 0.0, %v1263
    %v1265 = vpop.f32.mrb[0].mxu0
    %v1266 = vadd.f32 0.0, %v1265
    %1267 = vmatprep.mubr.bf16.mxu0 %v460
    %1268 = vmatmul.mubr.bf16.gmra.mrb[0].mxu0 %v459
    %v1269 = vpop.f32.mrb[0].mxu0
    %v1270 = vadd.f32 0.0, %v1269
    %v1271 = vpop.f32.mrb[0].mxu0
    %v1272 = vadd.f32 0.0, %v1271
    %v1273 = vpop.f32.mrb[0].mxu0
    %v1274 = vadd.f32 0.0, %v1273
    %v1275 = vpop.f32.mrb[0].mxu0
    %v1276 = vadd.f32 0.0, %v1275
    %1277 = vmatprep.mubr.bf16.mxu0 %v468
    %1278 = vmatmul.mubr.bf16.gmra.mrb[0].mxu0 %v467
    %v1279 = vpop.f32.mrb[0].mxu0
    %v1280 = vadd.f32 0.0, %v1279
    %v1281 = vpop.f32.mrb[0].mxu0
    %v1282 = vadd.f32 0.0, %v1281
    %v1283 = vpop.f32.mrb[0].mxu0
    %v1284 = vadd.f32 0.0, %v1283
    %v1285 = vpop.f32.mrb[0].mxu0
    %v1286 = vadd.f32 0.0, %v1285
    %1287 = vmatprep.mubr.bf16.mxu0 %v476
    %1288 = vmatmul.mubr.bf16.gmra.mrb[0].mxu0 %v475
    %v1289 = vpop.f32.mrb[0].mxu0
    %v1290 = vadd.f32 0.0, %v1289
    %v1291 = vpop.f32.mrb[0].mxu0
    %v1292 = vadd.f32 0.0, %v1291
    %v1293 = vpop.f32.mrb[0].mxu0
    %v1294 = vadd.f32 0.0, %v1293
    %v1295 = vpop.f32.mrb[0].mxu0
    %v1296 = vadd.f32 0.0, %v1295
    %1297 = vmatprep.mubr.bf16.mxu0 %v484
    %1298 = vmatmul.mubr.bf16.gmra.mrb[0].mxu0 %v483
    %v1299 = vpop.f32.mrb[0].mxu0
    %v1300 = vadd.f32 0.0, %v1299
    %v1301 = vpop.f32.mrb[0].mxu0
    %v1302 = vadd.f32 0.0, %v1301
    %v1303 = vpop.f32.mrb[0].mxu0
    %v1304 = vadd.f32 0.0, %v1303
    %v1305 = vpop.f32.mrb[0].mxu0
    %v1306 = vadd.f32 0.0, %v1305
    %1307 = vdwg.mxu0
    %1308 = vmatprep.subr.bf16.mxu0 %v972
    %1309 = vmatpush1.bf16.msra.mxu0 %v971
    %1310 = vmatprep.subr.bf16.mxu0 %v974
    %1311 = vmatpush1.bf16.msra.mxu0 %v973
    %1312 = vmatprep.subr.bf16.mxu0 %v976
    %1313 = vmatpush1.bf16.msra.mxu0 %v975
    %1314 = vmatprep.subr.bf16.mxu0 %v978
    %1315 = vmatpush1.bf16.msra.mxu0 %v977
    %1316 = vmatprep.subr.bf16.mxu0 %v980
    %1317 = vmatpush1.bf16.msra.mxu0 %v979
    %1318 = vmatprep.subr.bf16.mxu0 %v982
    %1319 = vmatpush1.bf16.msra.mxu0 %v981
    %1320 = vmatprep.subr.bf16.mxu0 %v984
    %1321 = vmatpush1.bf16.msra.mxu0 %v983
    %1322 = vmatprep.subr.bf16.mxu0 %v986
    %1323 = vmatpush1.bf16.msra.mxu0 %v985
    %1324 = vmatprep.subr.bf16.mxu0 %v988
    %1325 = vmatpush1.bf16.msra.mxu0 %v987
    %1326 = vmatprep.subr.bf16.mxu0 %v990
    %1327 = vmatpush1.bf16.msra.mxu0 %v989
    %1328 = vmatprep.subr.bf16.mxu0 %v992
    %1329 = vmatpush1.bf16.msra.mxu0 %v991
    %1330 = vmatprep.subr.bf16.mxu0 %v994
    %1331 = vmatpush1.bf16.msra.mxu0 %v993
    %1332 = vmatprep.subr.bf16.mxu0 %v996
    %1333 = vmatpush1.bf16.msra.mxu0 %v995
    %1334 = vmatprep.subr.bf16.mxu0 %v998
    %1335 = vmatpush1.bf16.msra.mxu0 %v997
    %1336 = vmatprep.subr.bf16.mxu0 %v1000
    %1337 = vmatpush1.bf16.msra.mxu0 %v999
    %1338 = vmatprep.subr.bf16.mxu0 %v1002
    %1339 = vmatpush1.bf16.msra.mxu0 %v1001
    %1340 = vmatprep.mubr.bf16.mxu0 %v430
    %1341 = vmatmul.mubr.bf16.gmra.mrb[0].mxu0 %v429
    %v1342 = vpop.f32.mrb[0].mxu0
    %v1343 = vadd.f32 %v1230, %v1342
    %v1344 = vpop.f32.mrb[0].mxu0
    %v1345 = vadd.f32 %v1232, %v1344
    %v1346 = vpop.f32.mrb[0].mxu0
    %v1347 = vadd.f32 %v1234, %v1346
    %v1348 = vpop.f32.mrb[0].mxu0
    %v1349 = vadd.f32 %v1236, %v1348
    %1350 = vmatprep.mubr.bf16.mxu0 %v438
    %1351 = vmatmul.mubr.bf16.gmra.mrb[0].mxu0 %v437
    %v1352 = vpop.f32.mrb[0].mxu0
    %v1353 = vadd.f32 %v1240, %v1352
    %v1354 = vpop.f32.mrb[0].mxu0
    %v1355 = vadd.f32 %v1242, %v1354
    %v1356 = vpop.f32.mrb[0].mxu0
    %v1357 = vadd.f32 %v1244, %v1356
    %v1358 = vpop.f32.mrb[0].mxu0
    %v1359 = vadd.f32 %v1246, %v1358
    %1360 = vmatprep.mubr.bf16.mxu0 %v446
    %1361 = vmatmul.mubr.bf16.gmra.mrb[0].mxu0 %v445
    %v1362 = vpop.f32.mrb[0].mxu0
    %v1363 = vadd.f32 %v1250, %v1362
    %v1364 = vpop.f32.mrb[0].mxu0
    %v1365 = vadd.f32 %v1252, %v1364
    %v1366 = vpop.f32.mrb[0].mxu0
    %v1367 = vadd.f32 %v1254, %v1366
    %v1368 = vpop.f32.mrb[0].mxu0
    %v1369 = vadd.f32 %v1256, %v1368
    %1370 = vmatprep.mubr.bf16.mxu0 %v454
    %1371 = vmatmul.mubr.bf16.gmra.mrb[0].mxu0 %v453
    %v1372 = vpop.f32.mrb[0].mxu0
    %v1373 = vadd.f32 %v1260, %v1372
    %v1374 = vpop.f32.mrb[0].mxu0
    %v1375 = vadd.f32 %v1262, %v1374
    %v1376 = vpop.f32.mrb[0].mxu0
    %v1377 = vadd.f32 %v1264, %v1376
    %v1378 = vpop.f32.mrb[0].mxu0
    %v1379 = vadd.f32 %v1266, %v1378
    %1380 = vmatprep.mubr.bf16.mxu0 %v462
    %1381 = vmatmul.mubr.bf16.gmra.mrb[0].mxu0 %v461
    %v1382 = vpop.f32.mrb[0].mxu0
    %v1383 = vadd.f32 %v1270, %v1382
    %v1384 = vpop.f32.mrb[0].mxu0
    %v1385 = vadd.f32 %v1272, %v1384
    %v1386 = vpop.f32.mrb[0].mxu0
    %v1387 = vadd.f32 %v1274, %v1386
    %v1388 = vpop.f32.mrb[0].mxu0
    %v1389 = vadd.f32 %v1276, %v1388
    %1390 = vmatprep.mubr.bf16.mxu0 %v470
    %1391 = vmatmul.mubr.bf16.gmra.mrb[0].mxu0 %v469
    %v1392 = vpop.f32.mrb[0].mxu0
    %v1393 = vadd.f32 %v1280, %v1392
    %v1394 = vpop.f32.mrb[0].mxu0
    %v1395 = vadd.f32 %v1282, %v1394
    %v1396 = vpop.f32.mrb[0].mxu0
    %v1397 = vadd.f32 %v1284, %v1396
    %v1398 = vpop.f32.mrb[0].mxu0
    %v1399 = vadd.f32 %v1286, %v1398
    %1400 = vmatprep.mubr.bf16.mxu0 %v478
    %1401 = vmatmul.mubr.bf16.gmra.mrb[0].mxu0 %v477
    %v1402 = vpop.f32.mrb[0].mxu0
    %v1403 = vadd.f32 %v1290, %v1402
    %v1404 = vpop.f32.mrb[0].mxu0
    %v1405 = vadd.f32 %v1292, %v1404
    %v1406 = vpop.f32.mrb[0].mxu0
    %v1407 = vadd.f32 %v1294, %v1406
    %v1408 = vpop.f32.mrb[0].mxu0
    %v1409 = vadd.f32 %v1296, %v1408
    %1410 = vmatprep.mubr.bf16.mxu0 %v486
    %1411 = vmatmul.mubr.bf16.gmra.mrb[0].mxu0 %v485
    %v1412 = vpop.f32.mrb[0].mxu0
    %v1413 = vadd.f32 %v1300, %v1412
    %v1414 = vpop.f32.mrb[0].mxu0
    %v1415 = vadd.f32 %v1302, %v1414
    %v1416 = vpop.f32.mrb[0].mxu0
    %v1417 = vadd.f32 %v1304, %v1416
    %v1418 = vpop.f32.mrb[0].mxu0
    %v1419 = vadd.f32 %v1306, %v1418
    %1420 = vdwg.mxu0
    %1421 = vmatprep.subr.bf16.mxu0 %v1004
    %1422 = vmatpush1.bf16.msra.mxu0 %v1003
    %1423 = vmatprep.subr.bf16.mxu0 %v1006
    %1424 = vmatpush1.bf16.msra.mxu0 %v1005
    %1425 = vmatprep.subr.bf16.mxu0 %v1008
    %1426 = vmatpush1.bf16.msra.mxu0 %v1007
    %1427 = vmatprep.subr.bf16.mxu0 %v1010
    %1428 = vmatpush1.bf16.msra.mxu0 %v1009
    %1429 = vmatprep.subr.bf16.mxu0 %v1012
    %1430 = vmatpush1.bf16.msra.mxu0 %v1011
    %1431 = vmatprep.subr.bf16.mxu0 %v1014
    %1432 = vmatpush1.bf16.msra.mxu0 %v1013
    %1433 = vmatprep.subr.bf16.mxu0 %v1016
    %1434 = vmatpush1.bf16.msra.mxu0 %v1015
    %1435 = vmatprep.subr.bf16.mxu0 %v1018
    %1436 = vmatpush1.bf16.msra.mxu0 %v1017
    %1437 = vmatprep.subr.bf16.mxu0 %v1020
    %1438 = vmatpush1.bf16.msra.mxu0 %v1019
    %1439 = vmatprep.subr.bf16.mxu0 %v1022
    %1440 = vmatpush1.bf16.msra.mxu0 %v1021
    %1441 = vmatprep.subr.bf16.mxu0 %v1024
    %1442 = vmatpush1.bf16.msra.mxu0 %v1023
    %1443 = vmatprep.subr.bf16.mxu0 %v1026
    %1444 = vmatpush1.bf16.msra.mxu0 %v1025
    %1445 = vmatprep.subr.bf16.mxu0 %v1028
    %1446 = vmatpush1.bf16.msra.mxu0 %v1027
    %1447 = vmatprep.subr.bf16.mxu0 %v1030
    %1448 = vmatpush1.bf16.msra.mxu0 %v1029
    %1449 = vmatprep.subr.bf16.mxu0 %v1032
    %1450 = vmatpush1.bf16.msra.mxu0 %v1031
    %1451 = vmatprep.subr.bf16.mxu0 %v1034
    %1452 = vmatpush1.bf16.msra.mxu0 %v1033
    %1453 = vmatprep.mubr.bf16.mxu0 %v432
    %1454 = vmatmul.mubr.bf16.gmra.mrb[0].mxu0 %v431
    %v1455 = vpop.f32.mrb[0].mxu0
    %v1456 = vadd.f32 %v1343, %v1455
    %v1457 = vpop.f32.mrb[0].mxu0
    %v1458 = vadd.f32 %v1345, %v1457
    %v1459 = vpop.f32.mrb[0].mxu0
    %v1460 = vadd.f32 %v1347, %v1459
    %v1461 = vpop.f32.mrb[0].mxu0
    %v1462 = vadd.f32 %v1349, %v1461
    %1463 = vmatprep.mubr.bf16.mxu0 %v440
    %1464 = vmatmul.mubr.bf16.gmra.mrb[0].mxu0 %v439
    %v1465 = vpop.f32.mrb[0].mxu0
    %v1466 = vadd.f32 %v1353, %v1465
    %v1467 = vpop.f32.mrb[0].mxu0
    %v1468 = vadd.f32 %v1355, %v1467
    %v1469 = vpop.f32.mrb[0].mxu0
    %v1470 = vadd.f32 %v1357, %v1469
    %v1471 = vpop.f32.mrb[0].mxu0
    %v1472 = vadd.f32 %v1359, %v1471
    %1473 = vmatprep.mubr.bf16.mxu0 %v448
    %1474 = vmatmul.mubr.bf16.gmra.mrb[0].mxu0 %v447
    %v1475 = vpop.f32.mrb[0].mxu0
    %v1476 = vadd.f32 %v1363, %v1475
    %v1477 = vpop.f32.mrb[0].mxu0
    %v1478 = vadd.f32 %v1365, %v1477
    %v1479 = vpop.f32.mrb[0].mxu0
    %v1480 = vadd.f32 %v1367, %v1479
    %v1481 = vpop.f32.mrb[0].mxu0
    %v1482 = vadd.f32 %v1369, %v1481
    %1483 = vmatprep.mubr.bf16.mxu0 %v456
    %1484 = vmatmul.mubr.bf16.gmra.mrb[0].mxu0 %v455
    %v1485 = vpop.f32.mrb[0].mxu0
    %v1486 = vadd.f32 %v1373, %v1485
    %v1487 = vpop.f32.mrb[0].mxu0
    %v1488 = vadd.f32 %v1375, %v1487
    %v1489 = vpop.f32.mrb[0].mxu0
    %v1490 = vadd.f32 %v1377, %v1489
    %v1491 = vpop.f32.mrb[0].mxu0
    %v1492 = vadd.f32 %v1379, %v1491
    %1493 = vmatprep.mubr.bf16.mxu0 %v464
    %1494 = vmatmul.mubr.bf16.gmra.mrb[0].mxu0 %v463
    %v1495 = vpop.f32.mrb[0].mxu0
    %v1496 = vadd.f32 %v1383, %v1495
    %v1497 = vpop.f32.mrb[0].mxu0
    %v1498 = vadd.f32 %v1385, %v1497
    %v1499 = vpop.f32.mrb[0].mxu0
    %v1500 = vadd.f32 %v1387, %v1499
    %v1501 = vpop.f32.mrb[0].mxu0
    %v1502 = vadd.f32 %v1389, %v1501
    %1503 = vmatprep.mubr.bf16.mxu0 %v472
    %1504 = vmatmul.mubr.bf16.gmra.mrb[0].mxu0 %v471
    %v1505 = vpop.f32.mrb[0].mxu0
    %v1506 = vadd.f32 %v1393, %v1505
    %v1507 = vpop.f32.mrb[0].mxu0
    %v1508 = vadd.f32 %v1395, %v1507
    %v1509 = vpop.f32.mrb[0].mxu0
    %v1510 = vadd.f32 %v1397, %v1509
    %v1511 = vpop.f32.mrb[0].mxu0
    %v1512 = vadd.f32 %v1399, %v1511
    %1513 = vmatprep.mubr.bf16.mxu0 %v480
    %1514 = vmatmul.mubr.bf16.gmra.mrb[0].mxu0 %v479
    %v1515 = vpop.f32.mrb[0].mxu0
    %v1516 = vadd.f32 %v1403, %v1515
    %v1517 = vpop.f32.mrb[0].mxu0
    %v1518 = vadd.f32 %v1405, %v1517
    %v1519 = vpop.f32.mrb[0].mxu0
    %v1520 = vadd.f32 %v1407, %v1519
    %v1521 = vpop.f32.mrb[0].mxu0
    %v1522 = vadd.f32 %v1409, %v1521
    %1523 = vmatprep.mubr.bf16.mxu0 %v488
    %1524 = vmatmul.mubr.bf16.gmra.mrb[0].mxu0 %v487
    %v1525 = vpop.f32.mrb[0].mxu0
    %v1526 = vadd.f32 %v1413, %v1525
    %v1527 = vpop.f32.mrb[0].mxu0
    %v1528 = vadd.f32 %v1415, %v1527
    %v1529 = vpop.f32.mrb[0].mxu0
    %v1530 = vadd.f32 %v1417, %v1529
    %v1531 = vpop.f32.mrb[0].mxu0
    %v1532 = vadd.f32 %v1419, %v1531
    %1533 = vdwg.mxu0
    %1534 = vmatprep.subr.bf16.mxu0 %v1036
    %1535 = vmatpush1.bf16.msra.mxu0 %v1035
    %1536 = vmatprep.subr.bf16.mxu0 %v1038
    %1537 = vmatpush1.bf16.msra.mxu0 %v1037
    %1538 = vmatprep.subr.bf16.mxu0 %v1040
    %1539 = vmatpush1.bf16.msra.mxu0 %v1039
    %1540 = vmatprep.subr.bf16.mxu0 %v1042
    %1541 = vmatpush1.bf16.msra.mxu0 %v1041
    %1542 = vmatprep.subr.bf16.mxu0 %v1044
    %1543 = vmatpush1.bf16.msra.mxu0 %v1043
    %1544 = vmatprep.subr.bf16.mxu0 %v1046
    %1545 = vmatpush1.bf16.msra.mxu0 %v1045
    %1546 = vmatprep.subr.bf16.mxu0 %v1048
    %1547 = vmatpush1.bf16.msra.mxu0 %v1047
    %1548 = vmatprep.subr.bf16.mxu0 %v1050
    %1549 = vmatpush1.bf16.msra.mxu0 %v1049
    %1550 = vmatprep.subr.bf16.mxu0 %v1052
    %1551 = vmatpush1.bf16.msra.mxu0 %v1051
    %1552 = vmatprep.subr.bf16.mxu0 %v1054
    %1553 = vmatpush1.bf16.msra.mxu0 %v1053
    %1554 = vmatprep.subr.bf16.mxu0 %v1056
    %1555 = vmatpush1.bf16.msra.mxu0 %v1055
    %1556 = vmatprep.subr.bf16.mxu0 %v1058
    %1557 = vmatpush1.bf16.msra.mxu0 %v1057
    %1558 = vmatprep.subr.bf16.mxu0 %v1060
    %1559 = vmatpush1.bf16.msra.mxu0 %v1059
    %1560 = vmatprep.subr.bf16.mxu0 %v1062
    %1561 = vmatpush1.bf16.msra.mxu0 %v1061
    %1562 = vmatprep.subr.bf16.mxu0 %v1064
    %1563 = vmatpush1.bf16.msra.mxu0 %v1063
    %1564 = vmatprep.subr.bf16.mxu0 %v1066
    %1565 = vmatpush1.bf16.msra.mxu0 %v1065
    %1566 = vmatprep.mubr.bf16.mxu0 %v434
    %1567 = vmatmul.mubr.bf16.gmra.mrb[0].mxu0 %v433
    %v1568 = vpop.f32.mrb[0].mxu0
    %v1569 = vadd.f32 %v1456, %v1568
    %v1570 = vpop.f32.mrb[0].mxu0
    %v1571 = vadd.f32 %v1458, %v1570
    %v1572 = vpop.f32.mrb[0].mxu0
    %v1573 = vadd.f32 %v1460, %v1572
    %v1574 = vpop.f32.mrb[0].mxu0
    %v1575 = vadd.f32 %v1462, %v1574
    %1576 = vmatprep.mubr.bf16.mxu0 %v442
    %1577 = vmatmul.mubr.bf16.gmra.mrb[0].mxu0 %v441
    %v1578 = vpop.f32.mrb[0].mxu0
    %v1579 = vadd.f32 %v1466, %v1578
    %v1580 = vpop.f32.mrb[0].mxu0
    %v1581 = vadd.f32 %v1468, %v1580
    %v1582 = vpop.f32.mrb[0].mxu0
    %v1583 = vadd.f32 %v1470, %v1582
    %v1584 = vpop.f32.mrb[0].mxu0
    %v1585 = vadd.f32 %v1472, %v1584
    %1586 = vmatprep.mubr.bf16.mxu0 %v450
    %1587 = vmatmul.mubr.bf16.gmra.mrb[0].mxu0 %v449
    %v1588 = vpop.f32.mrb[0].mxu0
    %v1589 = vadd.f32 %v1476, %v1588
    %v1590 = vpop.f32.mrb[0].mxu0
    %v1591 = vadd.f32 %v1478, %v1590
    %v1592 = vpop.f32.mrb[0].mxu0
    %v1593 = vadd.f32 %v1480, %v1592
    %v1594 = vpop.f32.mrb[0].mxu0
    %v1595 = vadd.f32 %v1482, %v1594
    %1596 = vmatprep.mubr.bf16.mxu0 %v458
    %1597 = vmatmul.mubr.bf16.gmra.mrb[0].mxu0 %v457
    %v1598 = vpop.f32.mrb[0].mxu0
    %v1599 = vadd.f32 %v1486, %v1598
    %v1600 = vpop.f32.mrb[0].mxu0
    %v1601 = vadd.f32 %v1488, %v1600
    %v1602 = vpop.f32.mrb[0].mxu0
    %v1603 = vadd.f32 %v1490, %v1602
    %v1604 = vpop.f32.mrb[0].mxu0
    %v1605 = vadd.f32 %v1492, %v1604
    %1606 = vmatprep.mubr.bf16.mxu0 %v466
    %1607 = vmatmul.mubr.bf16.gmra.mrb[0].mxu0 %v465
    %v1608 = vpop.f32.mrb[0].mxu0
    %v1609 = vadd.f32 %v1496, %v1608
    %v1610 = vpop.f32.mrb[0].mxu0
    %v1611 = vadd.f32 %v1498, %v1610
    %v1612 = vpop.f32.mrb[0].mxu0
    %v1613 = vadd.f32 %v1500, %v1612
    %v1614 = vpop.f32.mrb[0].mxu0
    %v1615 = vadd.f32 %v1502, %v1614
    %1616 = vmatprep.mubr.bf16.mxu0 %v474
    %1617 = vmatmul.mubr.bf16.gmra.mrb[0].mxu0 %v473
    %v1618 = vpop.f32.mrb[0].mxu0
    %v1619 = vadd.f32 %v1506, %v1618
    %v1620 = vpop.f32.mrb[0].mxu0
    %v1621 = vadd.f32 %v1508, %v1620
    %v1622 = vpop.f32.mrb[0].mxu0
    %v1623 = vadd.f32 %v1510, %v1622
    %v1624 = vpop.f32.mrb[0].mxu0
    %v1625 = vadd.f32 %v1512, %v1624
    %1626 = vmatprep.mubr.bf16.mxu0 %v482
    %1627 = vmatmul.mubr.bf16.gmra.mrb[0].mxu0 %v481
    %v1628 = vpop.f32.mrb[0].mxu0
    %v1629 = vadd.f32 %v1516, %v1628
    %v1630 = vpop.f32.mrb[0].mxu0
    %v1631 = vadd.f32 %v1518, %v1630
    %v1632 = vpop.f32.mrb[0].mxu0
    %v1633 = vadd.f32 %v1520, %v1632
    %v1634 = vpop.f32.mrb[0].mxu0
    %v1635 = vadd.f32 %v1522, %v1634
    %1636 = vmatprep.mubr.bf16.mxu0 %v490
    %1637 = vmatmul.mubr.bf16.gmra.mrb[0].mxu0 %v489
    %v1638 = vpop.f32.mrb[0].mxu0
    %v1639 = vadd.f32 %v1526, %v1638
    %v1640 = vpop.f32.mrb[0].mxu0
    %v1641 = vadd.f32 %v1528, %v1640
    %v1642 = vpop.f32.mrb[0].mxu0
    %v1643 = vadd.f32 %v1530, %v1642
    %v1644 = vpop.f32.mrb[0].mxu0
    %v1645 = vadd.f32 %v1532, %v1644
    %1646 = vdwg.mxu0
    %v1647 = vpack.c.bf16 %v1573, %v1569
    %v1648 = vpack.c.bf16 %v1583, %v1579
    %v1649 = vpack.c.bf16 %v1593, %v1589
    %v1650 = vpack.c.bf16 %v1603, %v1599
    %v1651 = vpack.c.bf16 %v1613, %v1609
    %v1652 = vpack.c.bf16 %v1623, %v1619
    %v1653 = vpack.c.bf16 %v1633, %v1629
    %v1654 = vpack.c.bf16 %v1643, %v1639
    %v1663 = vunpack.c.l.b16 %v1647
    %v1664 = vunpack.c.h.b16 %v1647
    %v1665 = vunpack.c.l.b16 %v1648
    %v1666 = vunpack.c.h.b16 %v1648
    %v1667 = vunpack.c.l.b16 %v1649
    %v1668 = vunpack.c.h.b16 %v1649
    %v1669 = vunpack.c.l.b16 %v1650
    %v1670 = vunpack.c.h.b16 %v1650
    %v1671 = vunpack.c.l.b16 %v1651
    %v1672 = vunpack.c.h.b16 %v1651
    %v1673 = vunpack.c.l.b16 %v1652
    %v1674 = vunpack.c.h.b16 %v1652
    %v1675 = vunpack.c.l.b16 %v1653
    %v1676 = vunpack.c.h.b16 %v1653
    %v1677 = vunpack.c.l.b16 %v1654
    %v1678 = vunpack.c.h.b16 %v1654
    %v1679 = vpack.c.b16 %v1663, %v1663
    %v1680 = vpack.c.b16 %v1664, %v1664
    %v1681 = vpack.c.b16 %v1665, %v1665
    %v1682 = vpack.c.b16 %v1666, %v1666
    %v1683 = vpack.c.b16 %v1667, %v1667
    %v1684 = vpack.c.b16 %v1668, %v1668
    %v1685 = vpack.c.b16 %v1669, %v1669
    %v1686 = vpack.c.b16 %v1670, %v1670
    %v1687 = vpack.c.b16 %v1671, %v1671
    %v1688 = vpack.c.b16 %v1672, %v1672
    %v1689 = vpack.c.b16 %v1673, %v1673
    %v1690 = vpack.c.b16 %v1674, %v1674
    %v1691 = vpack.c.b16 %v1675, %v1675
    %v1692 = vpack.c.b16 %v1676, %v1676
    %v1693 = vpack.c.b16 %v1677, %v1677
    %v1694 = vpack.c.b16 %v1678, %v1678
    %1711 = vst [vmem:[#allocation7] sm:$0xf] %v1679
    %1712 = vst [vmem:[#allocation7 + $0x4] sm:$0xf] %v1680
    %1713 = vst [vmem:[#allocation7 + $0x8] sm:$0xf] %v1681
    %1714 = vst [vmem:[#allocation7 + $0xc] sm:$0xf] %v1682
    %1715 = vst [vmem:[#allocation7 + $0x10] sm:$0xf] %v1683
    %1716 = vst [vmem:[#allocation7 + $0x14] sm:$0xf] %v1684
    %1717 = vst [vmem:[#allocation7 + $0x18] sm:$0xf] %v1685
    %1718 = vst [vmem:[#allocation7 + $0x1c] sm:$0xf] %v1686
    %1719 = vst [vmem:[#allocation7 + $0x20] sm:$0xf] %v1687
    %1720 = vst [vmem:[#allocation7 + $0x24] sm:$0xf] %v1688
    %1721 = vst [vmem:[#allocation7 + $0x28] sm:$0xf] %v1689
    %1722 = vst [vmem:[#allocation7 + $0x2c] sm:$0xf] %v1690
    %1723 = vst [vmem:[#allocation7 + $0x30] sm:$0xf] %v1691
    %1724 = vst [vmem:[#allocation7 + $0x34] sm:$0xf] %v1692
    %1725 = vst [vmem:[#allocation7 + $0x38] sm:$0xf] %v1693
    %1726 = vst [vmem:[#allocation7 + $0x3c] sm:$0xf] %v1694
    %v1727 = vpack.c.bf16 %v1575, %v1571
    %v1728 = vpack.c.bf16 %v1585, %v1581
    %v1729 = vpack.c.bf16 %v1595, %v1591
    %v1730 = vpack.c.bf16 %v1605, %v1601
    %v1731 = vpack.c.bf16 %v1615, %v1611
    %v1732 = vpack.c.bf16 %v1625, %v1621
    %v1733 = vpack.c.bf16 %v1635, %v1631
    %v1734 = vpack.c.bf16 %v1645, %v1641
    %v1743 = vunpack.c.l.b16 %v1727
    %v1744 = vunpack.c.h.b16 %v1727
    %v1745 = vunpack.c.l.b16 %v1728
    %v1746 = vunpack.c.h.b16 %v1728
    %v1747 = vunpack.c.l.b16 %v1729
    %v1748 = vunpack.c.h.b16 %v1729
    %v1749 = vunpack.c.l.b16 %v1730
    %v1750 = vunpack.c.h.b16 %v1730
    %v1751 = vunpack.c.l.b16 %v1731
    %v1752 = vunpack.c.h.b16 %v1731
    %v1753 = vunpack.c.l.b16 %v1732
    %v1754 = vunpack.c.h.b16 %v1732
    %v1755 = vunpack.c.l.b16 %v1733
    %v1756 = vunpack.c.h.b16 %v1733
    %v1757 = vunpack.c.l.b16 %v1734
    %v1758 = vunpack.c.h.b16 %v1734
    %v1759 = vpack.c.b16 %v1743, %v1743
    %v1760 = vpack.c.b16 %v1744, %v1744
    %v1761 = vpack.c.b16 %v1745, %v1745
    %v1762 = vpack.c.b16 %v1746, %v1746
    %v1763 = vpack.c.b16 %v1747, %v1747
    %v1764 = vpack.c.b16 %v1748, %v1748
    %v1765 = vpack.c.b16 %v1749, %v1749
    %v1766 = vpack.c.b16 %v1750, %v1750
    %v1767 = vpack.c.b16 %v1751, %v1751
    %v1768 = vpack.c.b16 %v1752, %v1752
    %v1769 = vpack.c.b16 %v1753, %v1753
    %v1770 = vpack.c.b16 %v1754, %v1754
    %v1771 = vpack.c.b16 %v1755, %v1755
    %v1772 = vpack.c.b16 %v1756, %v1756
    %v1773 = vpack.c.b16 %v1757, %v1757
    %v1774 = vpack.c.b16 %v1758, %v1758
    %1791 = vst [vmem:[#allocation8] sm:$0xf] %v1759
    %1792 = vst [vmem:[#allocation8 + $0x4] sm:$0xf] %v1760
    %1793 = vst [vmem:[#allocation8 + $0x8] sm:$0xf] %v1761
    %1794 = vst [vmem:[#allocation8 + $0xc] sm:$0xf] %v1762
    %1795 = vst [vmem:[#allocation8 + $0x10] sm:$0xf] %v1763
    %1796 = vst [vmem:[#allocation8 + $0x14] sm:$0xf] %v1764
    %1797 = vst [vmem:[#allocation8 + $0x18] sm:$0xf] %v1765
    %1798 = vst [vmem:[#allocation8 + $0x1c] sm:$0xf] %v1766
    %1799 = vst [vmem:[#allocation8 + $0x20] sm:$0xf] %v1767
    %1800 = vst [vmem:[#allocation8 + $0x24] sm:$0xf] %v1768
    %1801 = vst [vmem:[#allocation8 + $0x28] sm:$0xf] %v1769
    %1802 = vst [vmem:[#allocation8 + $0x2c] sm:$0xf] %v1770
    %1803 = vst [vmem:[#allocation8 + $0x30] sm:$0xf] %v1771
    %1804 = vst [vmem:[#allocation8 + $0x34] sm:$0xf] %v1772
    %1805 = vst [vmem:[#allocation8 + $0x38] sm:$0xf] %v1773
    %1806 = vst [vmem:[#allocation8 + $0x3c] sm:$0xf] %v1774
    // Predicated region
    $region18: #{tpu_custom_call.1} parent=1 // pred_check
      _
    $region19: #{tpu_custom_call.1} parent=1 // pred_check_branch
      %1808 = sbr.rel (0) target = $region21
    $region20: #{tpu_custom_call.1} parent=1 // pred_region
      %s1810 = ssub.s32 1024, 1024
      %1811 = vsyncadd [#allocation4], %s1810
      %s1812 = sshll.u32 [#allocation7], 4
      %s1813 = int_to_ptr.vmem [resolvable:$true] %s1812
      %1818 = dma.vmem_to_hbm [thread:$0]  %s1813, 1024, %s2, [#allocation4], 64, 64, 4
    $region21: #{tpu_custom_call.1} parent=1 // pred_fallthru
      _
    // Predicated region
    $region22: #{tpu_custom_call.1} parent=1 // pred_check
      _
    $region23: #{tpu_custom_call.1} parent=1 // pred_check_branch
      %1820 = sbr.rel (0) target = $region25
    $region24: #{tpu_custom_call.1} parent=1 // pred_region
      %s1822 = ssub.s32 1024, 1024
      %1823 = vsyncadd [#allocation9], %s1822
      %s1824 = sshll.u32 [#allocation8], 4
      %s1825 = int_to_ptr.vmem [resolvable:$true] %s1824
      %1830 = dma.vmem_to_hbm [thread:$0]  %s1825, 1024, %s3, [#allocation9], 64, 64, 4
    $region25: #{tpu_custom_call.1} parent=1 // pred_fallthru
      _
    // Predicated region
    $region26: #{tpu_custom_call.1} parent=1 // pred_check
      _
    $region27: #{tpu_custom_call.1} parent=1 // pred_check_branch
      %1832 = sbr.rel (0) target = $region29
    $region28: #{tpu_custom_call.1} parent=1 // pred_region
      %1833 = dma.done [#allocation4], 1024
    $region29: #{tpu_custom_call.1} parent=1 // pred_fallthru
      _
    // Predicated region
    $region30: #{tpu_custom_call.1} parent=1 // pred_check
      _
    $region31: #{tpu_custom_call.1} parent=1 // pred_check_branch
      %1835 = sbr.rel (0) target = $region33
    $region32: #{tpu_custom_call.1} parent=1 // pred_region
      %1836 = dma.done [#allocation9], 1024
    $region33: #{tpu_custom_call.1} parent=1 // pred_fallthru
      _
    %1837 = vsyncpa [#allocation3], 1
    %1838 = vsyncpa [#allocation6], 1
    %1839 = vsyncpa [#allocation4], 1
    %1840 = vsyncpa [#allocation9], 1

</llo_original>
